<compile_context>
chip_gen: v5e
topology: v5e:2x2
jax: 0.10.0
libtpu: 0.0.40
codegen_flags: <defaults>
</compile_context>

<pallas_src>
import numpy as np
import jax
import jax.numpy as jnp
from jax.experimental import pallas as pl
from jax.experimental.pallas import tpu as pltpu


# ---------------------------------------------------------------------------
# Pallas kernel: fused ResidualBlock on a tile of `nt` images.
# ---------------------------------------------------------------------------
def _resblock_kernel(lhs1_ref, w1_ref, t1_ref, w2_ref, tsum_ref, o_ref, cp_scr):
    nt, H, _ = lhs1_ref.shape
    wc = o_ref.shape[-1]                       # W * Cout  (lane-dense)
    M = nt * H

    # conv1 (3x3, pad=1) + 1x1 skip conv as ONE banded matmul (BN1 scale folded
    # into the weight on the host).
    a = jnp.dot(lhs1_ref[...].reshape(M, -1), w1_ref[...],
                preferred_element_type=jnp.float32)           # (M, 2*wc)
    c1 = jnp.maximum(a[:, :wc] + t1_ref[...], 0.0)            # BN1 shift + ReLU
    skip = a[:, wc:]                                          # 1x1 skip conv

    # conv2 (3x3, pad=1): 3 banded matmuls over kh-shifted rows.  The W-axis
    # zero padding is already folded into the banded weight; only the H axis
    # needs explicit zero rows, provided by a small VMEM scratch.
    cp_scr[:, 0:1, :] = jnp.zeros((nt, 1, wc), cp_scr.dtype)
    cp_scr[:, H + 1:H + 2, :] = jnp.zeros((nt, 1, wc), cp_scr.dtype)
    cp_scr[:, 1:H + 1, :] = c1.reshape(nt, H, wc).astype(cp_scr.dtype)

    acc = skip + tsum_ref[...]                 # BN2 shift + skip bias folded in
    for kh in range(3):                        # static unroll: 3 MXU matmuls
        patch = cp_scr[:, kh:kh + H, :].reshape(M, wc)
        acc = acc + jnp.dot(patch, w2_ref[kh],
                            preferred_element_type=jnp.float32)
    o_ref[...] = acc.reshape(nt, H, wc)


# ---------------------------------------------------------------------------
# Host-side parameter folding & banded-weight construction
# ---------------------------------------------------------------------------
def _fold_bn(gamma, beta, mean, var, conv_bias, eps):
    s = np.asarray(gamma, np.float32) / np.sqrt(np.asarray(var, np.float32) + eps)
    t = (s * (np.asarray(conv_bias, np.float32) - np.asarray(mean, np.float32))
         + np.asarray(beta, np.float32))
    return s, t


def prepare_kernel_params(p, H, W, eps=1e-5):
    cin, cout = p['w1'].shape[2], p['w1'].shape[3]
    s1, t1 = _fold_bn(p['bn1_gamma'], p['bn1_beta'], p['bn1_mean'],
                      p['bn1_var'], p['b1'], eps)
    s2, t2 = _fold_bn(p['bn2_gamma'], p['bn2_beta'], p['bn2_mean'],
                      p['bn2_var'], p['b2'], eps)
    w1s = np.asarray(p['w1'], np.float32) * s1        # BN scale folded in
    w2s = np.asarray(p['w2'], np.float32) * s2
    if p['ws'] is not None:
        ws = np.asarray(p['ws'], np.float32)
        bs = np.asarray(p['bs'], np.float32)
    else:                                             # identity skip
        ws = np.eye(cin, dtype=np.float32)
        bs = np.zeros((cout,), np.float32)

    # conv1 + skip banded matrix: (3*W*cin, 2*W*cout).
    # Row = kh*W*cin + w_in*cin + ci.  Column w_out*cout + co holds
    # w1s[kh, kw] with kw = w_in - w_out + 1 in {0,1,2} (W padding implicit);
    # column W*cout + w_out*cout + co holds the skip weight (kh==1, w_in==w_out).
    wbig1 = np.zeros((3 * W * cin, 2 * W * cout), np.float32)
    for kh in range(3):
        for kw in range(3):
            for wo in range(W):
                wi = wo + kw - 1
                if 0 <= wi < W:
                    wbig1[kh * W * cin + wi * cin:kh * W * cin + (wi + 1) * cin,
                          wo * cout:(wo + 1) * cout] = w1s[kh, kw]
    for wo in range(W):
        wbig1[W * cin + wo * cin:W * cin + (wo + 1) * cin,
              W * cout + wo * cout:W * cout + (wo + 1) * cout] = ws

    # conv2 per-kh banded matrices: (3, W*cout, W*cout).
    wbig2 = np.zeros((3, W * cout, W * cout), np.float32)
    for kh in range(3):
        for kw in range(3):
            for wo in range(W):
                wi = wo + kw - 1
                if 0 <= wi < W:
                    wbig2[kh, wi * cout:(wi + 1) * cout,
                          wo * cout:(wo + 1) * cout] = w2s[kh, kw]

    t1_t = np.tile(t1, W).reshape(1, W * cout)
    tsum = np.tile(t2 + bs, W).reshape(1, W * cout)
    return {'wbig1': jnp.asarray(wbig1, jnp.bfloat16),
            'wbig2': jnp.asarray(wbig2, jnp.bfloat16),
            't1': jnp.asarray(t1_t, jnp.float32),
            'tsum': jnp.asarray(tsum, jnp.float32)}


# ---------------------------------------------------------------------------
# Wrapper: NCHW in / NCHW out, batch tiled over the grid.
# ---------------------------------------------------------------------------
def residual_block(x_nchw, kp, *, block_n=8):
    N, Cin, H, W = x_nchw.shape
    wc = kp['wbig2'].shape[-1]                 # W * Cout
    cout = wc // W
    assert kp['wbig1'].shape == (3 * W * Cin, 2 * wc)

    nt = min(block_n, N)
    n_pad = pl.cdiv(N, nt) * nt
    x = jnp.transpose(x_nchw, (0, 2, 3, 1)).astype(jnp.bfloat16)   # NHWC bf16
    if n_pad != N:
        x = jnp.pad(x, ((0, n_pad - N), (0, 0), (0, 0), (0, 0)))

    # Layout plumbing (XLA side): per output row h, stack input rows
    # [h-1 | h | h+1] (zero rows at the image border) on the lane axis.
    xp = jnp.pad(x, ((0, 0), (1, 1), (0, 0), (0, 0)))
    rows = jnp.stack([xp[:, dy:dy + H] for dy in range(3)], axis=2)
    lhs1 = rows.reshape(n_pad, H, 3 * W * Cin)

    out = pl.pallas_call(
        _resblock_kernel,
        grid=(n_pad // nt,),
        in_specs=[
            pl.BlockSpec((nt, H, 3 * W * Cin), lambda i: (i, 0, 0)),
            pl.BlockSpec((3 * W * Cin, 2 * wc), lambda i: (0, 0)),
            pl.BlockSpec((1, wc), lambda i: (0, 0)),
            pl.BlockSpec((3, wc, wc), lambda i: (0, 0, 0)),
            pl.BlockSpec((1, wc), lambda i: (0, 0)),
        ],
        out_specs=pl.BlockSpec((nt, H, wc), lambda i: (i, 0, 0)),
        out_shape=jax.ShapeDtypeStruct((n_pad, H, wc), jnp.float32),
        scratch_shapes=[pltpu.VMEM((nt, H + 2, wc), jnp.bfloat16)],
        compiler_params=pltpu.CompilerParams(
            dimension_semantics=("parallel",)),
    )(lhs1, kp['wbig1'], kp['t1'], kp['wbig2'], kp['tsum'])

    out = out[:N].reshape(N, H, W, cout)
    return jnp.transpose(out, (0, 3, 1, 2))    # NCHW


# ---------------------------------------------------------------------------
# References
# ---------------------------------------------------------------------------
def residual_block_ref_bf16(x_nchw, p, eps=1e-5):
    """Reference with the same bf16 rounding points as the kernel."""
    s1 = p['bn1_gamma'] / jnp.sqrt(p['bn1_var'] + eps)
    t1 = s1 * (p['b1'] - p['bn1_mean']) + p['bn1_beta']
    s2 = p['bn2_gamma'] / jnp.sqrt(p['bn2_var'] + eps)
    t2 = s2 * (p['b2'] - p['bn2_mean']) + p['bn2_beta']
    x = jnp.transpose(x_nchw, (0, 2, 3, 1)).astype(jnp.bfloat16)
    w1s = (p['w1'] * s1).astype(jnp.bfloat16)
    w2s = (p['w2'] * s2).astype(jnp.bfloat16)

    def conv(inp, w):
        return jax.lax.conv_general_dilated(
            inp, w, (1, 1), 'SAME',
            dimension_numbers=('NHWC', 'HWIO', 'NHWC'),
            preferred_element_type=jnp.float32)

    c1 = jnp.maximum(conv(x, w1s) + t1, 0.0).astype(jnp.bfloat16)
    c2 = conv(c1, w2s) + t2
    if p['ws'] is not None:
        skip = jnp.einsum('nhwc,cd->nhwd', x, p['ws'].astype(jnp.bfloat16),
                          preferred_element_type=jnp.float32) + p['bs']
    else:
        skip = x.astype(jnp.float32)
    return jnp.transpose(c2 + skip, (0, 3, 1, 2))


def residual_block_ref_f32(x_nchw, p, eps=1e-5):
    """Full-f32 reference of the exact module semantics (eval-mode BN)."""
    x = jnp.transpose(x_nchw, (0, 2, 3, 1))

    def conv(inp, w):
        return jax.lax.conv_general_dilated(
            inp, w, (1, 1), 'SAME',
            dimension_numbers=('NHWC', 'HWIO', 'NHWC'))

    def bn(z, g, b, m, v):
        return (z - m) / jnp.sqrt(v + eps) * g + b

    y = jnp.maximum(bn(conv(x, p['w1']) + p['b1'], p['bn1_gamma'],
                       p['bn1_beta'], p['bn1_mean'], p['bn1_var']), 0.0)
    y = bn(conv(y, p['w2']) + p['b2'], p['bn2_gamma'], p['bn2_beta'],
           p['bn2_mean'], p['bn2_var'])
    skip = (jnp.einsum('nhwc,cd->nhwd', x, p['ws']) + p['bs']
            if p['ws'] is not None else x)
    return jnp.transpose(y + skip, (0, 3, 1, 2))


# ---------------------------------------------------------------------------
# Deterministic parameter initialization (non-trivial BN running statistics)
# ---------------------------------------------------------------------------
def init_params(key, cin, cout):
    ks = jax.random.split(key, 14)

    def rnd(k, shape, scale):
        return scale * jax.random.normal(k, shape, jnp.float32)

    p = {
        'w1': rnd(ks[0], (3, 3, cin, cout), 0.15),
        'b1': rnd(ks[1], (cout,), 0.05),
        'bn1_gamma': 1.0 + 0.1 * jax.random.normal(ks[2], (cout,), jnp.float32),
        'bn1_beta': rnd(ks[3], (cout,), 0.05),
        'bn1_mean': rnd(ks[4], (cout,), 0.05),
        'bn1_var': 0.9 + 0.2 * jax.random.uniform(ks[5], (cout,), jnp.float32),
        'w2': rnd(ks[6], (3, 3, cout, cout), 0.08),
        'b2': rnd(ks[7], (cout,), 0.05),
        'bn2_gamma': 1.0 + 0.1 * jax.random.normal(ks[8], (cout,), jnp.float32),
        'bn2_beta': rnd(ks[9], (cout,), 0.05),
        'bn2_mean': rnd(ks[10], (cout,), 0.05),
        'bn2_var': 0.9 + 0.2 * jax.random.uniform(ks[11], (cout,), jnp.float32),
    }
    if cin != cout:
        p['ws'] = rnd(ks[12], (cin, cout), 0.2)
        p['bs'] = rnd(ks[13], (cout,), 0.05)
    else:
        p['ws'] = None
        p['bs'] = None
    return p


# ---------------------------------------------------------------------------
if __name__ == "__main__":
    N, CIN, COUT, H, W = 8, 4, 16, 16, 16

    key = jax.random.PRNGKey(0)
    kparam, kx = jax.random.split(key)
    params = init_params(kparam, CIN, COUT)
    kernel_params = prepare_kernel_params(params, H, W)

    x = jax.random.normal(kx, (N, CIN, H, W), jnp.float32)

    fwd = jax.jit(lambda xx: residual_block(xx, kernel_params, block_n=8))
    out = fwd(x)
    jax.block_until_ready(out)
    assert out.shape == (N, COUT, H, W), out.shape

    ref_bf = residual_block_ref_bf16(x, params)
    err = float(jnp.max(jnp.abs(out - ref_bf.astype(jnp.float32))))
    assert err < 2e-2, f"max abs error vs bf16-matched reference: {err}"

    ref_f32 = residual_block_ref_f32(x, params)
    err32 = float(jnp.max(jnp.abs(out - ref_f32)))
    assert err32 < 6e-2, f"max abs error vs f32 module reference: {err32}"

    print("KERNEL_OK")
</pallas_src>

<mosaic_0001>
module attributes {stable_mosaic.version = 11 : i64} {
  func.func @_resblock_kernel(%arg0: i32, %arg1: memref<8x16x192xbf16, #tpu.memory_space<vmem>>, %arg2: memref<192x512xbf16, #tpu.memory_space<vmem>>, %arg3: memref<1x256xf32, #tpu.memory_space<vmem>>, %arg4: memref<3x256x256xbf16, #tpu.memory_space<vmem>>, %arg5: memref<1x256xf32, #tpu.memory_space<vmem>>, %arg6: memref<8x16x256xf32, #tpu.memory_space<vmem>>, %arg7: memref<8x18x256xbf16, #tpu.memory_space<vmem>>) attributes {dimension_semantics = [#tpu.dimension_semantics<parallel>], iteration_bounds = array<i64: 1>, scalar_prefetch = 0 : i64, scratch_operands = 1 : i64, tpu.core_type = #tpu.core_type<tc>, window_params = [{transform_indices = @transform_0, window_bounds = array<i64: 8, 16, 192>}, {pipeline_mode = #tpu.pipeline_mode<synchronous>, transform_indices = @transform_1, window_bounds = array<i64: 192, 512>}, {pipeline_mode = #tpu.pipeline_mode<synchronous>, transform_indices = @transform_2, window_bounds = array<i64: 1, 256>}, {pipeline_mode = #tpu.pipeline_mode<synchronous>, transform_indices = @transform_3, window_bounds = array<i64: 3, 256, 256>}, {pipeline_mode = #tpu.pipeline_mode<synchronous>, transform_indices = @transform_4, window_bounds = array<i64: 1, 256>}, {transform_indices = @transform_5, window_bounds = array<i64: 8, 16, 256>}]} {
    %c0 = arith.constant 0 : index
    %c0_0 = arith.constant 0 : index
    %c0_1 = arith.constant 0 : index
    %0 = vector.load %arg1[%c0, %c0_0, %c0_1] : memref<8x16x192xbf16, #tpu.memory_space<vmem>>, vector<8x16x192xbf16>
    %1 = vector.shape_cast %0 : vector<8x16x192xbf16> to vector<128x192xbf16>
    %c0_2 = arith.constant 0 : index
    %c0_3 = arith.constant 0 : index
    %2 = vector.load %arg2[%c0_2, %c0_3] : memref<192x512xbf16, #tpu.memory_space<vmem>>, vector<192x512xbf16>
    %cst = arith.constant dense<0.000000e+00> : vector<128x512xf32>
    %3 = tpu.matmul %1, %2, %cst {dimension_numbers = #tpu.dot_dimension_numbers<[1], [0], [0], [1], [0, 0, 1, 1], [], []>} : vector<128x192xbf16>, vector<192x512xbf16>, vector<128x512xf32> -> vector<128x512xf32>
    %4 = vector.extract_strided_slice %3 {offsets = [0, 0], sizes = [128, 256], strides = [1, 1]} : vector<128x512xf32> to vector<128x256xf32>
    %c0_4 = arith.constant 0 : index
    %c0_5 = arith.constant 0 : index
    %5 = vector.load %arg3[%c0_4, %c0_5] : memref<1x256xf32, #tpu.memory_space<vmem>>, vector<1x256xf32>
    %6 = vector.broadcast %5 : vector<1x256xf32> to vector<128x256xf32>
    %7 = arith.addf %4, %6 : vector<128x256xf32>
    %cst_6 = arith.constant 0.000000e+00 : f32
    %8 = vector.broadcast %cst_6 : f32 to vector<128x256xf32>
    %9 = arith.maximumf %7, %8 : vector<128x256xf32>
    %10 = vector.extract_strided_slice %3 {offsets = [0, 256], sizes = [128, 256], strides = [1, 1]} : vector<128x512xf32> to vector<128x256xf32>
    %cst_7 = arith.constant 0.000000e+00 : bf16
    %11 = vector.broadcast %cst_7 : bf16 to vector<8x1x256xbf16>
    %c0_8 = arith.constant 0 : index
    %c0_9 = arith.constant 0 : index
    %c0_10 = arith.constant 0 : index
    %12 = vector.load %arg7[%c0_8, %c0_9, %c0_10] : memref<8x18x256xbf16, #tpu.memory_space<vmem>>, vector<8x1x256xbf16>
    tpu.vector_store %arg7[%c0_8, %c0_9, %c0_10], %11 {strides = array<i32>} : memref<8x18x256xbf16, #tpu.memory_space<vmem>>, vector<8x1x256xbf16>,
    %cst_11 = arith.constant 0.000000e+00 : bf16
    %13 = vector.broadcast %cst_11 : bf16 to vector<8x1x256xbf16>
    %c0_12 = arith.constant 0 : index
    %c17 = arith.constant 17 : index
    %c0_13 = arith.constant 0 : index
    %14 = vector.load %arg7[%c0_12, %c17, %c0_13] : memref<8x18x256xbf16, #tpu.memory_space<vmem>>, vector<8x1x256xbf16>
    tpu.vector_store %arg7[%c0_12, %c17, %c0_13], %13 {strides = array<i32>} : memref<8x18x256xbf16, #tpu.memory_space<vmem>>, vector<8x1x256xbf16>,
    %15 = vector.shape_cast %9 : vector<128x256xf32> to vector<8x16x256xf32>
    %16 = arith.truncf %15 : vector<8x16x256xf32> to vector<8x16x256xbf16>
    %c0_14 = arith.constant 0 : index
    %c1 = arith.constant 1 : index
    %c0_15 = arith.constant 0 : index
    %17 = vector.load %arg7[%c0_14, %c1, %c0_15] : memref<8x18x256xbf16, #tpu.memory_space<vmem>>, vector<8x16x256xbf16>
    tpu.vector_store %arg7[%c0_14, %c1, %c0_15], %16 {strides = array<i32>} : memref<8x18x256xbf16, #tpu.memory_space<vmem>>, vector<8x16x256xbf16>,
    %c0_16 = arith.constant 0 : index
    %c0_17 = arith.constant 0 : index
    %18 = vector.load %arg5[%c0_16, %c0_17] : memref<1x256xf32, #tpu.memory_space<vmem>>, vector<1x256xf32>
    %19 = vector.broadcast %18 : vector<1x256xf32> to vector<128x256xf32>
    %20 = arith.addf %10, %19 : vector<128x256xf32>
    %c0_18 = arith.constant 0 : index
    %c0_19 = arith.constant 0 : index
    %c0_20 = arith.constant 0 : index
    %21 = vector.load %arg7[%c0_18, %c0_19, %c0_20] : memref<8x18x256xbf16, #tpu.memory_space<vmem>>, vector<8x16x256xbf16>
    %22 = vector.shape_cast %21 : vector<8x16x256xbf16> to vector<128x256xbf16>
    %c0_21 = arith.constant 0 : index
    %c0_22 = arith.constant 0 : index
    %c0_23 = arith.constant 0 : index
    %23 = vector.load %arg4[%c0_21, %c0_22, %c0_23] : memref<3x256x256xbf16, #tpu.memory_space<vmem>>, vector<1x256x256xbf16>
    %24 = vector.shape_cast %23 : vector<1x256x256xbf16> to vector<256x256xbf16>
    %cst_24 = arith.constant dense<0.000000e+00> : vector<128x256xf32>
    %25 = tpu.matmul %22, %24, %cst_24 {dimension_numbers = #tpu.dot_dimension_numbers<[1], [0], [0], [1], [0, 0, 1, 1], [], []>} : vector<128x256xbf16>, vector<256x256xbf16>, vector<128x256xf32> -> vector<128x256xf32>
    %26 = arith.addf %20, %25 : vector<128x256xf32>
    %c0_25 = arith.constant 0 : index
    %c1_26 = arith.constant 1 : index
    %c0_27 = arith.constant 0 : index
    %27 = vector.load %arg7[%c0_25, %c1_26, %c0_27] : memref<8x18x256xbf16, #tpu.memory_space<vmem>>, vector<8x16x256xbf16>
    %28 = vector.shape_cast %27 : vector<8x16x256xbf16> to vector<128x256xbf16>
    %c1_28 = arith.constant 1 : index
    %c0_29 = arith.constant 0 : index
    %c0_30 = arith.constant 0 : index
    %29 = vector.load %arg4[%c1_28, %c0_29, %c0_30] : memref<3x256x256xbf16, #tpu.memory_space<vmem>>, vector<1x256x256xbf16>
    %30 = vector.shape_cast %29 : vector<1x256x256xbf16> to vector<256x256xbf16>
    %cst_31 = arith.constant dense<0.000000e+00> : vector<128x256xf32>
    %31 = tpu.matmul %28, %30, %cst_31 {dimension_numbers = #tpu.dot_dimension_numbers<[1], [0], [0], [1], [0, 0, 1, 1], [], []>} : vector<128x256xbf16>, vector<256x256xbf16>, vector<128x256xf32> -> vector<128x256xf32>
    %32 = arith.addf %26, %31 : vector<128x256xf32>
    %c0_32 = arith.constant 0 : index
    %c2 = arith.constant 2 : index
    %c0_33 = arith.constant 0 : index
    %33 = vector.load %arg7[%c0_32, %c2, %c0_33] : memref<8x18x256xbf16, #tpu.memory_space<vmem>>, vector<8x16x256xbf16>
    %34 = vector.shape_cast %33 : vector<8x16x256xbf16> to vector<128x256xbf16>
    %c2_34 = arith.constant 2 : index
    %c0_35 = arith.constant 0 : index
    %c0_36 = arith.constant 0 : index
    %35 = vector.load %arg4[%c2_34, %c0_35, %c0_36] : memref<3x256x256xbf16, #tpu.memory_space<vmem>>, vector<1x256x256xbf16>
    %36 = vector.shape_cast %35 : vector<1x256x256xbf16> to vector<256x256xbf16>
    %cst_37 = arith.constant dense<0.000000e+00> : vector<128x256xf32>
    %37 = tpu.matmul %34, %36, %cst_37 {dimension_numbers = #tpu.dot_dimension_numbers<[1], [0], [0], [1], [0, 0, 1, 1], [], []>} : vector<128x256xbf16>, vector<256x256xbf16>, vector<128x256xf32> -> vector<128x256xf32>
    %38 = arith.addf %32, %37 : vector<128x256xf32>
    %39 = vector.shape_cast %38 : vector<128x256xf32> to vector<8x16x256xf32>
    %c0_38 = arith.constant 0 : index
    %c0_39 = arith.constant 0 : index
    %c0_40 = arith.constant 0 : index
    %40 = vector.load %arg6[%c0_38, %c0_39, %c0_40] : memref<8x16x256xf32, #tpu.memory_space<vmem>>, vector<8x16x256xf32>
    tpu.vector_store %arg6[%c0_38, %c0_39, %c0_40], %39 {strides = array<i32>} : memref<8x16x256xf32, #tpu.memory_space<vmem>>, vector<8x16x256xf32>,
    return
  }
  func.func @transform_0(%arg0: i32) -> (i32, i32, i32) {
    %c0_i32 = arith.constant 0 : i32
    %c0_i32_0 = arith.constant 0 : i32
    %c0_i32_1 = arith.constant 0 : i32
    return %arg0, %c0_i32, %c0_i32_0 : i32, i32, i32
  }
  func.func @transform_1(%arg0: i32) -> (i32, i32) {
    %c0_i32 = arith.constant 0 : i32
    %c0_i32_0 = arith.constant 0 : i32
    %c0_i32_1 = arith.constant 0 : i32
    return %c0_i32, %c0_i32_0 : i32, i32
  }
  func.func @transform_2(%arg0: i32) -> (i32, i32) {
    %c0_i32 = arith.constant 0 : i32
    %c0_i32_0 = arith.constant 0 : i32
    %c0_i32_1 = arith.constant 0 : i32
    return %c0_i32, %c0_i32_0 : i32, i32
  }
  func.func @transform_3(%arg0: i32) -> (i32, i32, i32) {
    %c0_i32 = arith.constant 0 : i32
    %c0_i32_0 = arith.constant 0 : i32
    %c0_i32_1 = arith.constant 0 : i32
    %c0_i32_2 = arith.constant 0 : i32
    return %c0_i32, %c0_i32_0, %c0_i32_1 : i32, i32, i32
  }
  func.func @transform_4(%arg0: i32) -> (i32, i32) {
    %c0_i32 = arith.constant 0 : i32
    %c0_i32_0 = arith.constant 0 : i32
    %c0_i32_1 = arith.constant 0 : i32
    return %c0_i32, %c0_i32_0 : i32, i32
  }
  func.func @transform_5(%arg0: i32) -> (i32, i32, i32) {
    %c0_i32 = arith.constant 0 : i32
    %c0_i32_0 = arith.constant 0 : i32
    %c0_i32_1 = arith.constant 0 : i32
    return %arg0, %c0_i32, %c0_i32_0 : i32, i32, i32
  }
}

</mosaic_0001>

<llo_original>
// kernel: _lambda_.1
$region0: #{_lambda_.1}
  #allocation0 [shape = 'u32[]', space=smem, size = 0x4, offset = 0x4, fixed_abs, tag = 'smem constant byte address 0x4 - core index']
  #allocation1 [shape = 'u32[72,128]{1,0:T(1,128)}', space=vmem, size = 0x9000, scoped, tag = 'internal scratch']
  #allocation2 [shape = 'bf16[8,18,256]{2,1,0:T(8,128)(2,1)}', space=vmem, size = 0x18000, scoped, tag = 'scratch operand']
  %s0 = inlined_call_operand.vmem [shape: bf16[8,16,192], index: 0, kind: input, shape index: {}]
  %s1 = inlined_call_operand.vmem [shape: bf16[192,512], index: 1, kind: input, shape index: {}]
  %s2 = inlined_call_operand.vmem [shape: f32[1,256], index: 2, kind: input, shape index: {}]
  %s3 = inlined_call_operand.vmem [shape: bf16[3,256,256], index: 3, kind: input, shape index: {}]
  %s4 = inlined_call_operand.vmem [shape: f32[1,256], index: 4, kind: input, shape index: {}]
  %s5 = inlined_call_operand.vmem [shape: f32[8,16,256], index: 5, kind: output, shape index: {}]
  %s6 = sld [smem:[#allocation0]]
  $region30: #{_lambda_.1} parent=0
    _
  %s8 = ssub.s32 1, %s6
  %s9 = scalar_select 0, %s8, %s6
  // Predicated region
  $region2: #{_lambda_.1} parent=0 // pred_check
    _
  $region3: #{_lambda_.1} parent=0 // pred_check_branch
    %11 = sbr.rel (0) target = $region5
  $region4: #{_lambda_.1} parent=0 // pred_region
    _
  $region5: #{_lambda_.1} parent=0 // pred_fallthru
    _
  // Predicated region
  $region6: #{_lambda_.1} parent=0 // pred_check
    _
  $region7: #{_lambda_.1} parent=0 // pred_check_branch
    %13 = sbr.rel (0) target = $region9
  $region8: #{_lambda_.1} parent=0 // pred_region
    _
  $region9: #{_lambda_.1} parent=0 // pred_fallthru
    _
  // Predicated region
  $region10: #{_lambda_.1} parent=0 // pred_check
    _
  $region11: #{_lambda_.1} parent=0 // pred_check_branch
    %15 = sbr.rel (0) target = $region13
  $region12: #{_lambda_.1} parent=0 // pred_region
    _
  $region13: #{_lambda_.1} parent=0 // pred_fallthru
    _
  // Predicated region
  $region14: #{_lambda_.1} parent=0 // pred_check
    _
  $region15: #{_lambda_.1} parent=0 // pred_check_branch
    %17 = sbr.rel (0) target = $region17
  $region16: #{_lambda_.1} parent=0 // pred_region
    _
  $region17: #{_lambda_.1} parent=0 // pred_fallthru
    _
  // Predicated region
  $region18: #{_lambda_.1} parent=0 // pred_check
    _
  $region19: #{_lambda_.1} parent=0 // pred_check_branch
    %19 = sbr.rel (0) target = $region21
  $region20: #{_lambda_.1} parent=0 // pred_region
    _
  $region21: #{_lambda_.1} parent=0 // pred_fallthru
    _
  %v21 = vld [vmem:[%s0] sm:$0xff]
  %v22 = vld [vmem:[%s0 + $0x8] sm:$0xff]
  %v23 = vld [vmem:[%s0 + $0x10] sm:$0xff]
  %v24 = vld [vmem:[%s0 + $0x18] sm:$0xff]
  %v25 = vld [vmem:[%s0 + $0x20] sm:$0xff]
  %v26 = vld [vmem:[%s0 + $0x28] sm:$0xff]
  %v27 = vld [vmem:[%s0 + $0x30] sm:$0xff]
  %v28 = vld [vmem:[%s0 + $0x38] sm:$0xff]
  %v29 = vld [vmem:[%s0 + $0x40] sm:$0xff]
  %v30 = vld [vmem:[%s0 + $0x48] sm:$0xff]
  %v31 = vld [vmem:[%s0 + $0x50] sm:$0xff]
  %v32 = vld [vmem:[%s0 + $0x58] sm:$0xff]
  %v33 = vld [vmem:[%s0 + $0x60] sm:$0xff]
  %v34 = vld [vmem:[%s0 + $0x68] sm:$0xff]
  %v35 = vld [vmem:[%s0 + $0x70] sm:$0xff]
  %v36 = vld [vmem:[%s0 + $0x78] sm:$0xff]
  %v37 = vld [vmem:[%s1] sm:$0xff]
  %v38 = vld [vmem:[%s1 + $0x8] sm:$0xff]
  %v39 = vld [vmem:[%s1 + $0x10] sm:$0xff]
  %v40 = vld [vmem:[%s1 + $0x18] sm:$0xff]
  %v41 = vld [vmem:[%s1 + $0x20] sm:$0xff]
  %v42 = vld [vmem:[%s1 + $0x28] sm:$0xff]
  %v43 = vld [vmem:[%s1 + $0x30] sm:$0xff]
  %v44 = vld [vmem:[%s1 + $0x38] sm:$0xff]
  %v45 = vld [vmem:[%s1 + $0x40] sm:$0xff]
  %v46 = vld [vmem:[%s1 + $0x48] sm:$0xff]
  %v47 = vld [vmem:[%s1 + $0x50] sm:$0xff]
  %v48 = vld [vmem:[%s1 + $0x58] sm:$0xff]
  %v49 = vld [vmem:[%s1 + $0x60] sm:$0xff]
  %v50 = vld [vmem:[%s1 + $0x68] sm:$0xff]
  %v51 = vld [vmem:[%s1 + $0x70] sm:$0xff]
  %v52 = vld [vmem:[%s1 + $0x78] sm:$0xff]
  %v53 = vld [vmem:[%s1 + $0x80] sm:$0xff]
  %v54 = vld [vmem:[%s1 + $0x88] sm:$0xff]
  %v55 = vld [vmem:[%s1 + $0x90] sm:$0xff]
  %v56 = vld [vmem:[%s1 + $0x98] sm:$0xff]
  %v57 = vld [vmem:[%s1 + $0xa0] sm:$0xff]
  %v58 = vld [vmem:[%s1 + $0xa8] sm:$0xff]
  %v59 = vld [vmem:[%s1 + $0xb0] sm:$0xff]
  %v60 = vld [vmem:[%s1 + $0xb8] sm:$0xff]
  %v61 = vld [vmem:[%s1 + $0xc0] sm:$0xff]
  %v62 = vld [vmem:[%s1 + $0xc8] sm:$0xff]
  %v63 = vld [vmem:[%s1 + $0xd0] sm:$0xff]
  %v64 = vld [vmem:[%s1 + $0xd8] sm:$0xff]
  %v65 = vld [vmem:[%s1 + $0xe0] sm:$0xff]
  %v66 = vld [vmem:[%s1 + $0xe8] sm:$0xff]
  %v67 = vld [vmem:[%s1 + $0xf0] sm:$0xff]
  %v68 = vld [vmem:[%s1 + $0xf8] sm:$0xff]
  %v69 = vld [vmem:[%s1 + $0x100] sm:$0xff]
  %v70 = vld [vmem:[%s1 + $0x108] sm:$0xff]
  %v71 = vld [vmem:[%s1 + $0x110] sm:$0xff]
  %v72 = vld [vmem:[%s1 + $0x118] sm:$0xff]
  %v73 = vld [vmem:[%s1 + $0x120] sm:$0xff]
  %v74 = vld [vmem:[%s1 + $0x128] sm:$0xff]
  %v75 = vld [vmem:[%s1 + $0x130] sm:$0xff]
  %v76 = vld [vmem:[%s1 + $0x138] sm:$0xff]
  %v77 = vld [vmem:[%s1 + $0x140] sm:$0xff]
  %v78 = vld [vmem:[%s1 + $0x148] sm:$0xff]
  %v79 = vld [vmem:[%s1 + $0x150] sm:$0xff]
  %v80 = vld [vmem:[%s1 + $0x158] sm:$0xff]
  %v81 = vld [vmem:[%s1 + $0x160] sm:$0xff]
  %v82 = vld [vmem:[%s1 + $0x168] sm:$0xff]
  %v83 = vld [vmem:[%s1 + $0x170] sm:$0xff]
  %v84 = vld [vmem:[%s1 + $0x178] sm:$0xff]
  %v101 = vunpack.c.l.b16 %v21
  %v102 = vunpack.c.h.b16 %v21
  %v103 = vunpack.c.l.b16 %v22
  %v104 = vunpack.c.h.b16 %v22
  %v105 = vunpack.c.l.b16 %v23
  %v106 = vunpack.c.h.b16 %v23
  %v107 = vunpack.c.l.b16 %v24
  %v108 = vunpack.c.h.b16 %v24
  %v109 = vunpack.c.l.b16 %v25
  %v110 = vunpack.c.h.b16 %v25
  %v111 = vunpack.c.l.b16 %v26
  %v112 = vunpack.c.h.b16 %v26
  %v113 = vunpack.c.l.b16 %v27
  %v114 = vunpack.c.h.b16 %v27
  %v115 = vunpack.c.l.b16 %v28
  %v116 = vunpack.c.h.b16 %v28
  %v117 = vunpack.c.l.b16 %v29
  %v118 = vunpack.c.h.b16 %v29
  %v119 = vunpack.c.l.b16 %v30
  %v120 = vunpack.c.h.b16 %v30
  %v121 = vunpack.c.l.b16 %v31
  %v122 = vunpack.c.h.b16 %v31
  %v123 = vunpack.c.l.b16 %v32
  %v124 = vunpack.c.h.b16 %v32
  %v125 = vunpack.c.l.b16 %v33
  %v126 = vunpack.c.h.b16 %v33
  %v127 = vunpack.c.l.b16 %v34
  %v128 = vunpack.c.h.b16 %v34
  %v129 = vunpack.c.l.b16 %v35
  %v130 = vunpack.c.h.b16 %v35
  %v131 = vunpack.c.l.b16 %v36
  %v132 = vunpack.c.h.b16 %v36
  %v133 = vpack.c.b16 %v103, %v101
  %v134 = vpack.c.b16 %v104, %v102
  %v135 = vpack.c.b16 %v107, %v105
  %v136 = vpack.c.b16 %v108, %v106
  %v137 = vpack.c.b16 %v111, %v109
  %v138 = vpack.c.b16 %v112, %v110
  %v139 = vpack.c.b16 %v115, %v113
  %v140 = vpack.c.b16 %v116, %v114
  %v141 = vpack.c.b16 %v119, %v117
  %v142 = vpack.c.b16 %v120, %v118
  %v143 = vpack.c.b16 %v123, %v121
  %v144 = vpack.c.b16 %v124, %v122
  %v145 = vpack.c.b16 %v127, %v125
  %v146 = vpack.c.b16 %v128, %v126
  %v147 = vpack.c.b16 %v131, %v129
  %v148 = vpack.c.b16 %v132, %v130
  %v205 = vunpack.c.l.b16 %v37
  %v206 = vunpack.c.h.b16 %v37
  %v207 = vunpack.c.l.b16 %v38
  %v208 = vunpack.c.h.b16 %v38
  %v209 = vunpack.c.l.b16 %v39
  %v210 = vunpack.c.h.b16 %v39
  %v211 = vunpack.c.l.b16 %v40
  %v212 = vunpack.c.h.b16 %v40
  %v213 = vunpack.c.l.b16 %v41
  %v214 = vunpack.c.h.b16 %v41
  %v215 = vunpack.c.l.b16 %v42
  %v216 = vunpack.c.h.b16 %v42
  %v217 = vunpack.c.l.b16 %v43
  %v218 = vunpack.c.h.b16 %v43
  %v219 = vunpack.c.l.b16 %v44
  %v220 = vunpack.c.h.b16 %v44
  %v221 = vunpack.c.l.b16 %v45
  %v222 = vunpack.c.h.b16 %v45
  %v223 = vunpack.c.l.b16 %v46
  %v224 = vunpack.c.h.b16 %v46
  %v225 = vunpack.c.l.b16 %v47
  %v226 = vunpack.c.h.b16 %v47
  %v227 = vunpack.c.l.b16 %v48
  %v228 = vunpack.c.h.b16 %v48
  %v229 = vunpack.c.l.b16 %v49
  %v230 = vunpack.c.h.b16 %v49
  %v231 = vunpack.c.l.b16 %v50
  %v232 = vunpack.c.h.b16 %v50
  %v233 = vunpack.c.l.b16 %v51
  %v234 = vunpack.c.h.b16 %v51
  %v235 = vunpack.c.l.b16 %v52
  %v236 = vunpack.c.h.b16 %v52
  %v237 = vunpack.c.l.b16 %v53
  %v238 = vunpack.c.h.b16 %v53
  %v239 = vunpack.c.l.b16 %v54
  %v240 = vunpack.c.h.b16 %v54
  %v241 = vunpack.c.l.b16 %v55
  %v242 = vunpack.c.h.b16 %v55
  %v243 = vunpack.c.l.b16 %v56
  %v244 = vunpack.c.h.b16 %v56
  %v245 = vunpack.c.l.b16 %v57
  %v246 = vunpack.c.h.b16 %v57
  %v247 = vunpack.c.l.b16 %v58
  %v248 = vunpack.c.h.b16 %v58
  %v249 = vunpack.c.l.b16 %v59
  %v250 = vunpack.c.h.b16 %v59
  %v251 = vunpack.c.l.b16 %v60
  %v252 = vunpack.c.h.b16 %v60
  %v253 = vunpack.c.l.b16 %v61
  %v254 = vunpack.c.h.b16 %v61
  %v255 = vunpack.c.l.b16 %v62
  %v256 = vunpack.c.h.b16 %v62
  %v257 = vunpack.c.l.b16 %v63
  %v258 = vunpack.c.h.b16 %v63
  %v259 = vunpack.c.l.b16 %v64
  %v260 = vunpack.c.h.b16 %v64
  %v261 = vunpack.c.l.b16 %v65
  %v262 = vunpack.c.h.b16 %v65
  %v263 = vunpack.c.l.b16 %v66
  %v264 = vunpack.c.h.b16 %v66
  %v265 = vunpack.c.l.b16 %v67
  %v266 = vunpack.c.h.b16 %v67
  %v267 = vunpack.c.l.b16 %v68
  %v268 = vunpack.c.h.b16 %v68
  %v269 = vunpack.c.l.b16 %v69
  %v270 = vunpack.c.h.b16 %v69
  %v271 = vunpack.c.l.b16 %v70
  %v272 = vunpack.c.h.b16 %v70
  %v273 = vunpack.c.l.b16 %v71
  %v274 = vunpack.c.h.b16 %v71
  %v275 = vunpack.c.l.b16 %v72
  %v276 = vunpack.c.h.b16 %v72
  %v277 = vunpack.c.l.b16 %v73
  %v278 = vunpack.c.h.b16 %v73
  %v279 = vunpack.c.l.b16 %v74
  %v280 = vunpack.c.h.b16 %v74
  %v281 = vunpack.c.l.b16 %v75
  %v282 = vunpack.c.h.b16 %v75
  %v283 = vunpack.c.l.b16 %v76
  %v284 = vunpack.c.h.b16 %v76
  %v285 = vunpack.c.l.b16 %v77
  %v286 = vunpack.c.h.b16 %v77
  %v287 = vunpack.c.l.b16 %v78
  %v288 = vunpack.c.h.b16 %v78
  %v289 = vunpack.c.l.b16 %v79
  %v290 = vunpack.c.h.b16 %v79
  %v291 = vunpack.c.l.b16 %v80
  %v292 = vunpack.c.h.b16 %v80
  %v293 = vunpack.c.l.b16 %v81
  %v294 = vunpack.c.h.b16 %v81
  %v295 = vunpack.c.l.b16 %v82
  %v296 = vunpack.c.h.b16 %v82
  %v297 = vunpack.c.l.b16 %v83
  %v298 = vunpack.c.h.b16 %v83
  %v299 = vunpack.c.l.b16 %v84
  %v300 = vunpack.c.h.b16 %v84
  %v301 = vpack.c.b16 %v209, %v205
  %v302 = vpack.c.b16 %v210, %v206
  %v303 = vpack.c.b16 %v211, %v207
  %v304 = vpack.c.b16 %v212, %v208
  %v305 = vpack.c.b16 %v217, %v213
  %v306 = vpack.c.b16 %v218, %v214
  %v307 = vpack.c.b16 %v219, %v215
  %v308 = vpack.c.b16 %v220, %v216
  %v309 = vpack.c.b16 %v225, %v221
  %v310 = vpack.c.b16 %v226, %v222
  %v311 = vpack.c.b16 %v227, %v223
  %v312 = vpack.c.b16 %v228, %v224
  %v313 = vpack.c.b16 %v233, %v229
  %v314 = vpack.c.b16 %v234, %v230
  %v315 = vpack.c.b16 %v235, %v231
  %v316 = vpack.c.b16 %v236, %v232
  %v317 = vpack.c.b16 %v241, %v237
  %v318 = vpack.c.b16 %v242, %v238
  %v319 = vpack.c.b16 %v243, %v239
  %v320 = vpack.c.b16 %v244, %v240
  %v321 = vpack.c.b16 %v249, %v245
  %v322 = vpack.c.b16 %v250, %v246
  %v323 = vpack.c.b16 %v251, %v247
  %v324 = vpack.c.b16 %v252, %v248
  %v325 = vpack.c.b16 %v257, %v253
  %v326 = vpack.c.b16 %v258, %v254
  %v327 = vpack.c.b16 %v259, %v255
  %v328 = vpack.c.b16 %v260, %v256
  %v329 = vpack.c.b16 %v265, %v261
  %v330 = vpack.c.b16 %v266, %v262
  %v331 = vpack.c.b16 %v267, %v263
  %v332 = vpack.c.b16 %v268, %v264
  %v333 = vpack.c.b16 %v273, %v269
  %v334 = vpack.c.b16 %v274, %v270
  %v335 = vpack.c.b16 %v275, %v271
  %v336 = vpack.c.b16 %v276, %v272
  %v337 = vpack.c.b16 %v281, %v277
  %v338 = vpack.c.b16 %v282, %v278
  %v339 = vpack.c.b16 %v283, %v279
  %v340 = vpack.c.b16 %v284, %v280
  %v341 = vpack.c.b16 %v289, %v285
  %v342 = vpack.c.b16 %v290, %v286
  %v343 = vpack.c.b16 %v291, %v287
  %v344 = vpack.c.b16 %v292, %v288
  %v345 = vpack.c.b16 %v297, %v293
  %v346 = vpack.c.b16 %v298, %v294
  %v347 = vpack.c.b16 %v299, %v295
  %v348 = vpack.c.b16 %v300, %v296
  %vm397 = vcmask 523264
  %v399 = vsel %vm397, %v134, 0
  %v402 = vsel %vm397, %v136, 0
  %v405 = vsel %vm397, %v138, 0
  %v408 = vsel %vm397, %v140, 0
  %v411 = vsel %vm397, %v142, 0
  %v414 = vsel %vm397, %v144, 0
  %v417 = vsel %vm397, %v146, 0
  %v420 = vsel %vm397, %v148, 0
  %422 = vmatpush.bf16.msra.mxu0 %v329
  %423 = vmatpush.bf16.msra.mxu0 %v325
  %424 = vmatpush.bf16.msra.mxu0 %v321
  %425 = vmatpush.bf16.msra.mxu0 %v317
  %426 = vmatpush.bf16.msra.mxu0 %v313
  %427 = vmatpush.bf16.msra.mxu0 %v309
  %428 = vmatpush.bf16.msra.mxu0 %v305
  %429 = vmatpush.bf16.msra.mxu0 %v301
  %430 = vmatmul.bf16.gmra.mxu0 %v133
  %v431 = vpop.f32.mrf.mxu0
  %v432 = vadd.f32 0.0, %v431
  %v433 = vpop.f32.mrf.mxu0
  %v434 = vadd.f32 0.0, %v433
  %435 = vmatmul.bf16.gmra.mxu0 %v135
  %v436 = vpop.f32.mrf.mxu0
  %v437 = vadd.f32 0.0, %v436
  %v438 = vpop.f32.mrf.mxu0
  %v439 = vadd.f32 0.0, %v438
  %440 = vmatmul.bf16.gmra.mxu0 %v137
  %v441 = vpop.f32.mrf.mxu0
  %v442 = vadd.f32 0.0, %v441
  %v443 = vpop.f32.mrf.mxu0
  %v444 = vadd.f32 0.0, %v443
  %445 = vmatmul.bf16.gmra.mxu0 %v139
  %v446 = vpop.f32.mrf.mxu0
  %v447 = vadd.f32 0.0, %v446
  %v448 = vpop.f32.mrf.mxu0
  %v449 = vadd.f32 0.0, %v448
  %450 = vmatmul.bf16.gmra.mxu0 %v141
  %v451 = vpop.f32.mrf.mxu0
  %v452 = vadd.f32 0.0, %v451
  %v453 = vpop.f32.mrf.mxu0
  %v454 = vadd.f32 0.0, %v453
  %455 = vmatmul.bf16.gmra.mxu0 %v143
  %v456 = vpop.f32.mrf.mxu0
  %v457 = vadd.f32 0.0, %v456
  %v458 = vpop.f32.mrf.mxu0
  %v459 = vadd.f32 0.0, %v458
  %460 = vmatmul.bf16.gmra.mxu0 %v145
  %v461 = vpop.f32.mrf.mxu0
  %v462 = vadd.f32 0.0, %v461
  %v463 = vpop.f32.mrf.mxu0
  %v464 = vadd.f32 0.0, %v463
  %465 = vmatmul.bf16.gmra.mxu0 %v147
  %v466 = vpop.f32.mrf.mxu0
  %v467 = vadd.f32 0.0, %v466
  %v468 = vpop.f32.mrf.mxu0
  %v469 = vadd.f32 0.0, %v468
  %470 = vdwg.mxu0
  %471 = vmatpush.bf16.msra.mxu0 0
  %472 = vmatpush.bf16.msra.mxu0 0
  %473 = vmatpush.bf16.msra.mxu0 0
  %474 = vmatpush.bf16.msra.mxu0 0
  %475 = vmatpush.bf16.msra.mxu0 %v345
  %476 = vmatpush.bf16.msra.mxu0 %v341
  %477 = vmatpush.bf16.msra.mxu0 %v337
  %478 = vmatpush.bf16.msra.mxu0 %v333
  %479 = vmatmul.bf16.gmra.mxu0 %v399
  %v480 = vpop.f32.mrf.mxu0
  %v481 = vadd.f32 %v432, %v480
  %v482 = vpop.f32.mrf.mxu0
  %v483 = vadd.f32 %v434, %v482
  %484 = vmatmul.bf16.gmra.mxu0 %v402
  %v485 = vpop.f32.mrf.mxu0
  %v486 = vadd.f32 %v437, %v485
  %v487 = vpop.f32.mrf.mxu0
  %v488 = vadd.f32 %v439, %v487
  %489 = vmatmul.bf16.gmra.mxu0 %v405
  %v490 = vpop.f32.mrf.mxu0
  %v491 = vadd.f32 %v442, %v490
  %v492 = vpop.f32.mrf.mxu0
  %v493 = vadd.f32 %v444, %v492
  %494 = vmatmul.bf16.gmra.mxu0 %v408
  %v495 = vpop.f32.mrf.mxu0
  %v496 = vadd.f32 %v447, %v495
  %v497 = vpop.f32.mrf.mxu0
  %v498 = vadd.f32 %v449, %v497
  %499 = vmatmul.bf16.gmra.mxu0 %v411
  %v500 = vpop.f32.mrf.mxu0
  %v501 = vadd.f32 %v452, %v500
  %v502 = vpop.f32.mrf.mxu0
  %v503 = vadd.f32 %v454, %v502
  %504 = vmatmul.bf16.gmra.mxu0 %v414
  %v505 = vpop.f32.mrf.mxu0
  %v506 = vadd.f32 %v457, %v505
  %v507 = vpop.f32.mrf.mxu0
  %v508 = vadd.f32 %v459, %v507
  %509 = vmatmul.bf16.gmra.mxu0 %v417
  %v510 = vpop.f32.mrf.mxu0
  %v511 = vadd.f32 %v462, %v510
  %v512 = vpop.f32.mrf.mxu0
  %v513 = vadd.f32 %v464, %v512
  %514 = vmatmul.bf16.gmra.mxu0 %v420
  %v515 = vpop.f32.mrf.mxu0
  %v516 = vadd.f32 %v467, %v515
  %v517 = vpop.f32.mrf.mxu0
  %v518 = vadd.f32 %v469, %v517
  %519 = vdwg.mxu0
  %520 = vmatpush.bf16.msra.mxu0 %v330
  %521 = vmatpush.bf16.msra.mxu0 %v326
  %522 = vmatpush.bf16.msra.mxu0 %v322
  %523 = vmatpush.bf16.msra.mxu0 %v318
  %524 = vmatpush.bf16.msra.mxu0 %v314
  %525 = vmatpush.bf16.msra.mxu0 %v310
  %526 = vmatpush.bf16.msra.mxu0 %v306
  %527 = vmatpush.bf16.msra.mxu0 %v302
  %528 = vmatmul.bf16.gmra.mxu0 %v133
  %v529 = vpop.f32.mrf.mxu0
  %v530 = vadd.f32 0.0, %v529
  %v531 = vpop.f32.mrf.mxu0
  %v532 = vadd.f32 0.0, %v531
  %533 = vmatmul.bf16.gmra.mxu0 %v135
  %v534 = vpop.f32.mrf.mxu0
  %v535 = vadd.f32 0.0, %v534
  %v536 = vpop.f32.mrf.mxu0
  %v537 = vadd.f32 0.0, %v536
  %538 = vmatmul.bf16.gmra.mxu0 %v137
  %v539 = vpop.f32.mrf.mxu0
  %v540 = vadd.f32 0.0, %v539
  %v541 = vpop.f32.mrf.mxu0
  %v542 = vadd.f32 0.0, %v541
  %543 = vmatmul.bf16.gmra.mxu0 %v139
  %v544 = vpop.f32.mrf.mxu0
  %v545 = vadd.f32 0.0, %v544
  %v546 = vpop.f32.mrf.mxu0
  %v547 = vadd.f32 0.0, %v546
  %548 = vmatmul.bf16.gmra.mxu0 %v141
  %v549 = vpop.f32.mrf.mxu0
  %v550 = vadd.f32 0.0, %v549
  %v551 = vpop.f32.mrf.mxu0
  %v552 = vadd.f32 0.0, %v551
  %553 = vmatmul.bf16.gmra.mxu0 %v143
  %v554 = vpop.f32.mrf.mxu0
  %v555 = vadd.f32 0.0, %v554
  %v556 = vpop.f32.mrf.mxu0
  %v557 = vadd.f32 0.0, %v556
  %558 = vmatmul.bf16.gmra.mxu0 %v145
  %v559 = vpop.f32.mrf.mxu0
  %v560 = vadd.f32 0.0, %v559
  %v561 = vpop.f32.mrf.mxu0
  %v562 = vadd.f32 0.0, %v561
  %563 = vmatmul.bf16.gmra.mxu0 %v147
  %v564 = vpop.f32.mrf.mxu0
  %v565 = vadd.f32 0.0, %v564
  %v566 = vpop.f32.mrf.mxu0
  %v567 = vadd.f32 0.0, %v566
  %568 = vdwg.mxu0
  %569 = vmatpush.bf16.msra.mxu0 0
  %570 = vmatpush.bf16.msra.mxu0 0
  %571 = vmatpush.bf16.msra.mxu0 0
  %572 = vmatpush.bf16.msra.mxu0 0
  %573 = vmatpush.bf16.msra.mxu0 %v346
  %574 = vmatpush.bf16.msra.mxu0 %v342
  %575 = vmatpush.bf16.msra.mxu0 %v338
  %576 = vmatpush.bf16.msra.mxu0 %v334
  %577 = vmatmul.bf16.gmra.mxu0 %v399
  %v578 = vpop.f32.mrf.mxu0
  %v579 = vadd.f32 %v530, %v578
  %v580 = vpop.f32.mrf.mxu0
  %v581 = vadd.f32 %v532, %v580
  %582 = vmatmul.bf16.gmra.mxu0 %v402
  %v583 = vpop.f32.mrf.mxu0
  %v584 = vadd.f32 %v535, %v583
  %v585 = vpop.f32.mrf.mxu0
  %v586 = vadd.f32 %v537, %v585
  %587 = vmatmul.bf16.gmra.mxu0 %v405
  %v588 = vpop.f32.mrf.mxu0
  %v589 = vadd.f32 %v540, %v588
  %v590 = vpop.f32.mrf.mxu0
  %v591 = vadd.f32 %v542, %v590
  %592 = vmatmul.bf16.gmra.mxu0 %v408
  %v593 = vpop.f32.mrf.mxu0
  %v594 = vadd.f32 %v545, %v593
  %v595 = vpop.f32.mrf.mxu0
  %v596 = vadd.f32 %v547, %v595
  %597 = vmatmul.bf16.gmra.mxu0 %v411
  %v598 = vpop.f32.mrf.mxu0
  %v599 = vadd.f32 %v550, %v598
  %v600 = vpop.f32.mrf.mxu0
  %v601 = vadd.f32 %v552, %v600
  %602 = vmatmul.bf16.gmra.mxu0 %v414
  %v603 = vpop.f32.mrf.mxu0
  %v604 = vadd.f32 %v555, %v603
  %v605 = vpop.f32.mrf.mxu0
  %v606 = vadd.f32 %v557, %v605
  %607 = vmatmul.bf16.gmra.mxu0 %v417
  %v608 = vpop.f32.mrf.mxu0
  %v609 = vadd.f32 %v560, %v608
  %v610 = vpop.f32.mrf.mxu0
  %v611 = vadd.f32 %v562, %v610
  %612 = vmatmul.bf16.gmra.mxu0 %v420
  %v613 = vpop.f32.mrf.mxu0
  %v614 = vadd.f32 %v565, %v613
  %v615 = vpop.f32.mrf.mxu0
  %v616 = vadd.f32 %v567, %v615
  %617 = vdwg.mxu0
  %618 = vmatpush.bf16.msra.mxu0 %v331
  %619 = vmatpush.bf16.msra.mxu0 %v327
  %620 = vmatpush.bf16.msra.mxu0 %v323
  %621 = vmatpush.bf16.msra.mxu0 %v319
  %622 = vmatpush.bf16.msra.mxu0 %v315
  %623 = vmatpush.bf16.msra.mxu0 %v311
  %624 = vmatpush.bf16.msra.mxu0 %v307
  %625 = vmatpush.bf16.msra.mxu0 %v303
  %626 = vmatmul.bf16.gmra.mxu0 %v133
  %v627 = vpop.f32.mrf.mxu0
  %v628 = vadd.f32 0.0, %v627
  %v629 = vpop.f32.mrf.mxu0
  %v630 = vadd.f32 0.0, %v629
  %631 = vmatmul.bf16.gmra.mxu0 %v135
  %v632 = vpop.f32.mrf.mxu0
  %v633 = vadd.f32 0.0, %v632
  %v634 = vpop.f32.mrf.mxu0
  %v635 = vadd.f32 0.0, %v634
  %636 = vmatmul.bf16.gmra.mxu0 %v137
  %v637 = vpop.f32.mrf.mxu0
  %v638 = vadd.f32 0.0, %v637
  %v639 = vpop.f32.mrf.mxu0
  %v640 = vadd.f32 0.0, %v639
  %641 = vmatmul.bf16.gmra.mxu0 %v139
  %v642 = vpop.f32.mrf.mxu0
  %v643 = vadd.f32 0.0, %v642
  %v644 = vpop.f32.mrf.mxu0
  %v645 = vadd.f32 0.0, %v644
  %646 = vmatmul.bf16.gmra.mxu0 %v141
  %v647 = vpop.f32.mrf.mxu0
  %v648 = vadd.f32 0.0, %v647
  %v649 = vpop.f32.mrf.mxu0
  %v650 = vadd.f32 0.0, %v649
  %651 = vmatmul.bf16.gmra.mxu0 %v143
  %v652 = vpop.f32.mrf.mxu0
  %v653 = vadd.f32 0.0, %v652
  %v654 = vpop.f32.mrf.mxu0
  %v655 = vadd.f32 0.0, %v654
  %656 = vmatmul.bf16.gmra.mxu0 %v145
  %v657 = vpop.f32.mrf.mxu0
  %v658 = vadd.f32 0.0, %v657
  %v659 = vpop.f32.mrf.mxu0
  %v660 = vadd.f32 0.0, %v659
  %661 = vmatmul.bf16.gmra.mxu0 %v147
  %v662 = vpop.f32.mrf.mxu0
  %v663 = vadd.f32 0.0, %v662
  %v664 = vpop.f32.mrf.mxu0
  %v665 = vadd.f32 0.0, %v664
  %666 = vdwg.mxu0
  %667 = vmatpush.bf16.msra.mxu0 0
  %668 = vmatpush.bf16.msra.mxu0 0
  %669 = vmatpush.bf16.msra.mxu0 0
  %670 = vmatpush.bf16.msra.mxu0 0
  %671 = vmatpush.bf16.msra.mxu0 %v347
  %672 = vmatpush.bf16.msra.mxu0 %v343
  %673 = vmatpush.bf16.msra.mxu0 %v339
  %674 = vmatpush.bf16.msra.mxu0 %v335
  %675 = vmatmul.bf16.gmra.mxu0 %v399
  %v676 = vpop.f32.mrf.mxu0
  %v677 = vadd.f32 %v628, %v676
  %v678 = vpop.f32.mrf.mxu0
  %v679 = vadd.f32 %v630, %v678
  %680 = vmatmul.bf16.gmra.mxu0 %v402
  %v681 = vpop.f32.mrf.mxu0
  %v682 = vadd.f32 %v633, %v681
  %v683 = vpop.f32.mrf.mxu0
  %v684 = vadd.f32 %v635, %v683
  %685 = vmatmul.bf16.gmra.mxu0 %v405
  %v686 = vpop.f32.mrf.mxu0
  %v687 = vadd.f32 %v638, %v686
  %v688 = vpop.f32.mrf.mxu0
  %v689 = vadd.f32 %v640, %v688
  %690 = vmatmul.bf16.gmra.mxu0 %v408
  %v691 = vpop.f32.mrf.mxu0
  %v692 = vadd.f32 %v643, %v691
  %v693 = vpop.f32.mrf.mxu0
  %v694 = vadd.f32 %v645, %v693
  %695 = vmatmul.bf16.gmra.mxu0 %v411
  %v696 = vpop.f32.mrf.mxu0
  %v697 = vadd.f32 %v648, %v696
  %v698 = vpop.f32.mrf.mxu0
  %v699 = vadd.f32 %v650, %v698
  %700 = vmatmul.bf16.gmra.mxu0 %v414
  %v701 = vpop.f32.mrf.mxu0
  %v702 = vadd.f32 %v653, %v701
  %v703 = vpop.f32.mrf.mxu0
  %v704 = vadd.f32 %v655, %v703
  %705 = vmatmul.bf16.gmra.mxu0 %v417
  %v706 = vpop.f32.mrf.mxu0
  %v707 = vadd.f32 %v658, %v706
  %v708 = vpop.f32.mrf.mxu0
  %v709 = vadd.f32 %v660, %v708
  %710 = vmatmul.bf16.gmra.mxu0 %v420
  %v711 = vpop.f32.mrf.mxu0
  %v712 = vadd.f32 %v663, %v711
  %v713 = vpop.f32.mrf.mxu0
  %v714 = vadd.f32 %v665, %v713
  %715 = vdwg.mxu0
  %716 = vmatpush.bf16.msra.mxu0 %v332
  %717 = vmatpush.bf16.msra.mxu0 %v328
  %718 = vmatpush.bf16.msra.mxu0 %v324
  %719 = vmatpush.bf16.msra.mxu0 %v320
  %720 = vmatpush.bf16.msra.mxu0 %v316
  %721 = vmatpush.bf16.msra.mxu0 %v312
  %722 = vmatpush.bf16.msra.mxu0 %v308
  %723 = vmatpush.bf16.msra.mxu0 %v304
  %724 = vmatmul.bf16.gmra.mxu0 %v133
  %v725 = vpop.f32.mrf.mxu0
  %v726 = vadd.f32 0.0, %v725
  %v727 = vpop.f32.mrf.mxu0
  %v728 = vadd.f32 0.0, %v727
  %729 = vmatmul.bf16.gmra.mxu0 %v135
  %v730 = vpop.f32.mrf.mxu0
  %v731 = vadd.f32 0.0, %v730
  %v732 = vpop.f32.mrf.mxu0
  %v733 = vadd.f32 0.0, %v732
  %734 = vmatmul.bf16.gmra.mxu0 %v137
  %v735 = vpop.f32.mrf.mxu0
  %v736 = vadd.f32 0.0, %v735
  %v737 = vpop.f32.mrf.mxu0
  %v738 = vadd.f32 0.0, %v737
  %739 = vmatmul.bf16.gmra.mxu0 %v139
  %v740 = vpop.f32.mrf.mxu0
  %v741 = vadd.f32 0.0, %v740
  %v742 = vpop.f32.mrf.mxu0
  %v743 = vadd.f32 0.0, %v742
  %744 = vmatmul.bf16.gmra.mxu0 %v141
  %v745 = vpop.f32.mrf.mxu0
  %v746 = vadd.f32 0.0, %v745
  %v747 = vpop.f32.mrf.mxu0
  %v748 = vadd.f32 0.0, %v747
  %749 = vmatmul.bf16.gmra.mxu0 %v143
  %v750 = vpop.f32.mrf.mxu0
  %v751 = vadd.f32 0.0, %v750
  %v752 = vpop.f32.mrf.mxu0
  %v753 = vadd.f32 0.0, %v752
  %754 = vmatmul.bf16.gmra.mxu0 %v145
  %v755 = vpop.f32.mrf.mxu0
  %v756 = vadd.f32 0.0, %v755
  %v757 = vpop.f32.mrf.mxu0
  %v758 = vadd.f32 0.0, %v757
  %759 = vmatmul.bf16.gmra.mxu0 %v147
  %v760 = vpop.f32.mrf.mxu0
  %v761 = vadd.f32 0.0, %v760
  %v762 = vpop.f32.mrf.mxu0
  %v763 = vadd.f32 0.0, %v762
  %764 = vdwg.mxu0
  %765 = vmatpush.bf16.msra.mxu0 0
  %766 = vmatpush.bf16.msra.mxu0 0
  %767 = vmatpush.bf16.msra.mxu0 0
  %768 = vmatpush.bf16.msra.mxu0 0
  %769 = vmatpush.bf16.msra.mxu0 %v348
  %770 = vmatpush.bf16.msra.mxu0 %v344
  %771 = vmatpush.bf16.msra.mxu0 %v340
  %772 = vmatpush.bf16.msra.mxu0 %v336
  %773 = vmatmul.bf16.gmra.mxu0 %v399
  %v774 = vpop.f32.mrf.mxu0
  %v775 = vadd.f32 %v726, %v774
  %v776 = vpop.f32.mrf.mxu0
  %v777 = vadd.f32 %v728, %v776
  %778 = vmatmul.bf16.gmra.mxu0 %v402
  %v779 = vpop.f32.mrf.mxu0
  %v780 = vadd.f32 %v731, %v779
  %v781 = vpop.f32.mrf.mxu0
  %v782 = vadd.f32 %v733, %v781
  %783 = vmatmul.bf16.gmra.mxu0 %v405
  %v784 = vpop.f32.mrf.mxu0
  %v785 = vadd.f32 %v736, %v784
  %v786 = vpop.f32.mrf.mxu0
  %v787 = vadd.f32 %v738, %v786
  %788 = vmatmul.bf16.gmra.mxu0 %v408
  %v789 = vpop.f32.mrf.mxu0
  %v790 = vadd.f32 %v741, %v789
  %v791 = vpop.f32.mrf.mxu0
  %v792 = vadd.f32 %v743, %v791
  %793 = vmatmul.bf16.gmra.mxu0 %v411
  %v794 = vpop.f32.mrf.mxu0
  %v795 = vadd.f32 %v746, %v794
  %v796 = vpop.f32.mrf.mxu0
  %v797 = vadd.f32 %v748, %v796
  %798 = vmatmul.bf16.gmra.mxu0 %v414
  %v799 = vpop.f32.mrf.mxu0
  %v800 = vadd.f32 %v751, %v799
  %v801 = vpop.f32.mrf.mxu0
  %v802 = vadd.f32 %v753, %v801
  %803 = vmatmul.bf16.gmra.mxu0 %v417
  %v804 = vpop.f32.mrf.mxu0
  %v805 = vadd.f32 %v756, %v804
  %v806 = vpop.f32.mrf.mxu0
  %v807 = vadd.f32 %v758, %v806
  %808 = vmatmul.bf16.gmra.mxu0 %v420
  %v809 = vpop.f32.mrf.mxu0
  %v810 = vadd.f32 %v761, %v809
  %v811 = vpop.f32.mrf.mxu0
  %v812 = vadd.f32 %v763, %v811
  %813 = vdwg.mxu0
  %v814 = vld [vmem:[%s2] sm:$0x3]
  %v816 = vperm.slane %v814, 0
  %v817 = vperm.slane %v814, 1
  %v820 = vadd.f32 %v481, %v816
  %v821 = vadd.f32 %v579, %v817
  %v822 = vadd.f32 %v483, %v816
  %v823 = vadd.f32 %v581, %v817
  %v824 = vadd.f32 %v486, %v816
  %v825 = vadd.f32 %v584, %v817
  %v826 = vadd.f32 %v488, %v816
  %v827 = vadd.f32 %v586, %v817
  %v828 = vadd.f32 %v491, %v816
  %v829 = vadd.f32 %v589, %v817
  %v830 = vadd.f32 %v493, %v816
  %v831 = vadd.f32 %v591, %v817
  %v832 = vadd.f32 %v496, %v816
  %v833 = vadd.f32 %v594, %v817
  %v834 = vadd.f32 %v498, %v816
  %v835 = vadd.f32 %v596, %v817
  %v836 = vadd.f32 %v501, %v816
  %v837 = vadd.f32 %v599, %v817
  %v838 = vadd.f32 %v503, %v816
  %v839 = vadd.f32 %v601, %v817
  %v840 = vadd.f32 %v506, %v816
  %v841 = vadd.f32 %v604, %v817
  %v842 = vadd.f32 %v508, %v816
  %v843 = vadd.f32 %v606, %v817
  %v844 = vadd.f32 %v511, %v816
  %v845 = vadd.f32 %v609, %v817
  %v846 = vadd.f32 %v513, %v816
  %v847 = vadd.f32 %v611, %v817
  %v848 = vadd.f32 %v516, %v816
  %v849 = vadd.f32 %v614, %v817
  %v850 = vadd.f32 %v518, %v816
  %v851 = vadd.f32 %v616, %v817
  %v852 = vmax.f32 %v820, 0.0
  %v853 = vmax.f32 %v821, 0.0
  %v854 = vmax.f32 %v822, 0.0
  %v855 = vmax.f32 %v823, 0.0
  %v856 = vmax.f32 %v824, 0.0
  %v857 = vmax.f32 %v825, 0.0
  %v858 = vmax.f32 %v826, 0.0
  %v859 = vmax.f32 %v827, 0.0
  %v860 = vmax.f32 %v828, 0.0
  %v861 = vmax.f32 %v829, 0.0
  %v862 = vmax.f32 %v830, 0.0
  %v863 = vmax.f32 %v831, 0.0
  %v864 = vmax.f32 %v832, 0.0
  %v865 = vmax.f32 %v833, 0.0
  %v866 = vmax.f32 %v834, 0.0
  %v867 = vmax.f32 %v835, 0.0
  %v868 = vmax.f32 %v836, 0.0
  %v869 = vmax.f32 %v837, 0.0
  %v870 = vmax.f32 %v838, 0.0
  %v871 = vmax.f32 %v839, 0.0
  %v872 = vmax.f32 %v840, 0.0
  %v873 = vmax.f32 %v841, 0.0
  %v874 = vmax.f32 %v842, 0.0
  %v875 = vmax.f32 %v843, 0.0
  %v876 = vmax.f32 %v844, 0.0
  %v877 = vmax.f32 %v845, 0.0
  %v878 = vmax.f32 %v846, 0.0
  %v879 = vmax.f32 %v847, 0.0
  %v880 = vmax.f32 %v848, 0.0
  %v881 = vmax.f32 %v849, 0.0
  %v882 = vmax.f32 %v850, 0.0
  %v883 = vmax.f32 %v851, 0.0
  %vm884 = vcmask 1040384
  %vm885 = vsmask.f32 256
  %vm886 = vmand %vm884, %vm885
  %vm887 = vcmask 1044484
  %vm888 = vsmask.f32 4352
  %vm889 = vmand %vm887, %vm888
  %vm890 = vmor %vm889, %vm886
  %v891 = vld [vmem:[#allocation2] sm:$0x11]
  %v892 = vsel %vm890, 0, %v891
  %893 = vst [vmem:[#allocation2] sm:$0x11] %v892
  %v894 = vld [vmem:[#allocation2 + $0x18] sm:$0x11]
  %v895 = vsel %vm890, 0, %v894
  %896 = vst [vmem:[#allocation2 + $0x18] sm:$0x11] %v895
  %v897 = vld [vmem:[#allocation2 + $0x30] sm:$0x11]
  %v898 = vsel %vm890, 0, %v897
  %899 = vst [vmem:[#allocation2 + $0x30] sm:$0x11] %v898
  %v900 = vld [vmem:[#allocation2 + $0x48] sm:$0x11]
  %v901 = vsel %vm890, 0, %v900
  %902 = vst [vmem:[#allocation2 + $0x48] sm:$0x11] %v901
  %v903 = vld [vmem:[#allocation2 + $0x60] sm:$0x11]
  %v904 = vsel %vm890, 0, %v903
  %905 = vst [vmem:[#allocation2 + $0x60] sm:$0x11] %v904
  %v906 = vld [vmem:[#allocation2 + $0x78] sm:$0x11]
  %v907 = vsel %vm890, 0, %v906
  %908 = vst [vmem:[#allocation2 + $0x78] sm:$0x11] %v907
  %v909 = vld [vmem:[#allocation2 + $0x90] sm:$0x11]
  %v910 = vsel %vm890, 0, %v909
  %911 = vst [vmem:[#allocation2 + $0x90] sm:$0x11] %v910
  %v912 = vld [vmem:[#allocation2 + $0xa8] sm:$0x11]
  %v913 = vsel %vm890, 0, %v912
  %914 = vst [vmem:[#allocation2 + $0xa8] sm:$0x11] %v913
  %vm915 = vsmask.f32 7938
  %vm916 = vmand %vm884, %vm915
  %vm917 = vsmask.f32 7954
  %vm918 = vmand %vm887, %vm917
  %vm919 = vmor %vm918, %vm916
  %v920 = vld [vmem:[#allocation2 + $0x10] sm:$0x11]
  %v921 = vsel %vm919, 0, %v920
  %922 = vst [vmem:[#allocation2 + $0x10] sm:$0x11] %v921
  %v923 = vld [vmem:[#allocation2 + $0x28] sm:$0x11]
  %v924 = vsel %vm919, 0, %v923
  %925 = vst [vmem:[#allocation2 + $0x28] sm:$0x11] %v924
  %v926 = vld [vmem:[#allocation2 + $0x40] sm:$0x11]
  %v927 = vsel %vm919, 0, %v926
  %928 = vst [vmem:[#allocation2 + $0x40] sm:$0x11] %v927
  %v929 = vld [vmem:[#allocation2 + $0x58] sm:$0x11]
  %v930 = vsel %vm919, 0, %v929
  %931 = vst [vmem:[#allocation2 + $0x58] sm:$0x11] %v930
  %v932 = vld [vmem:[#allocation2 + $0x70] sm:$0x11]
  %v933 = vsel %vm919, 0, %v932
  %934 = vst [vmem:[#allocation2 + $0x70] sm:$0x11] %v933
  %v935 = vld [vmem:[#allocation2 + $0x88] sm:$0x11]
  %v936 = vsel %vm919, 0, %v935
  %937 = vst [vmem:[#allocation2 + $0x88] sm:$0x11] %v936
  %v938 = vld [vmem:[#allocation2 + $0xa0] sm:$0x11]
  %v939 = vsel %vm919, 0, %v938
  %940 = vst [vmem:[#allocation2 + $0xa0] sm:$0x11] %v939
  %v941 = vld [vmem:[#allocation2 + $0xb8] sm:$0x11]
  %v942 = vsel %vm919, 0, %v941
  %943 = vst [vmem:[#allocation2 + $0xb8] sm:$0x11] %v942
  %v944 = vpack.c.bf16 %v853, %v852
  %v945 = vpack.c.bf16 %v855, %v854
  %v946 = vpack.c.bf16 %v857, %v856
  %v947 = vpack.c.bf16 %v859, %v858
  %v948 = vpack.c.bf16 %v861, %v860
  %v949 = vpack.c.bf16 %v863, %v862
  %v950 = vpack.c.bf16 %v865, %v864
  %v951 = vpack.c.bf16 %v867, %v866
  %v952 = vpack.c.bf16 %v869, %v868
  %v953 = vpack.c.bf16 %v871, %v870
  %v954 = vpack.c.bf16 %v873, %v872
  %v955 = vpack.c.bf16 %v875, %v874
  %v956 = vpack.c.bf16 %v877, %v876
  %v957 = vpack.c.bf16 %v879, %v878
  %v958 = vpack.c.bf16 %v881, %v880
  %v959 = vpack.c.bf16 %v883, %v882
  %vm960 = vsmask.f32 4368
  %vm961 = vmor %vm885, %vm960
  %v963 = vshrl.u32 %v944, 16
  %v965 = vrot.slane %v963, 7
  %v966 = vshll.u32 %v944, 16
  %v968 = vor.u32 %v965, %v966
  %v969 = vrot.slane %v965, 4
  %v971 = vshrl.u32 %v945, 16
  %v973 = vrot.slane %v971, 7
  %v974 = vshll.u32 %v945, 16
  %v976 = vor.u32 %v973, %v974
  %v977 = vsel %vm961, %v969, %v976
  %v978 = vrot.slane %v973, 4
  %v980 = vshrl.u32 %v946, 16
  %v982 = vrot.slane %v980, 7
  %v983 = vshll.u32 %v946, 16
  %v985 = vor.u32 %v982, %v983
  %v986 = vrot.slane %v982, 4
  %v988 = vshrl.u32 %v947, 16
  %v990 = vrot.slane %v988, 7
  %v991 = vshll.u32 %v947, 16
  %v993 = vor.u32 %v990, %v991
  %v994 = vsel %vm961, %v986, %v993
  %v995 = vrot.slane %v990, 4
  %v997 = vshrl.u32 %v948, 16
  %v999 = vrot.slane %v997, 7
  %v1000 = vshll.u32 %v948, 16
  %v1002 = vor.u32 %v999, %v1000
  %v1003 = vrot.slane %v999, 4
  %v1005 = vshrl.u32 %v949, 16
  %v1007 = vrot.slane %v1005, 7
  %v1008 = vshll.u32 %v949, 16
  %v1010 = vor.u32 %v1007, %v1008
  %v1011 = vsel %vm961, %v1003, %v1010
  %v1012 = vrot.slane %v1007, 4
  %v1014 = vshrl.u32 %v950, 16
  %v1016 = vrot.slane %v1014, 7
  %v1017 = vshll.u32 %v950, 16
  %v1019 = vor.u32 %v1016, %v1017
  %v1020 = vrot.slane %v1016, 4
  %v1022 = vshrl.u32 %v951, 16
  %v1024 = vrot.slane %v1022, 7
  %v1025 = vshll.u32 %v951, 16
  %v1027 = vor.u32 %v1024, %v1025
  %v1028 = vsel %vm961, %v1020, %v1027
  %v1029 = vrot.slane %v1024, 4
  %v1031 = vshrl.u32 %v952, 16
  %v1033 = vrot.slane %v1031, 7
  %v1034 = vshll.u32 %v952, 16
  %v1036 = vor.u32 %v1033, %v1034
  %v1037 = vrot.slane %v1033, 4
  %v1039 = vshrl.u32 %v953, 16
  %v1041 = vrot.slane %v1039, 7
  %v1042 = vshll.u32 %v953, 16
  %v1044 = vor.u32 %v1041, %v1042
  %v1045 = vsel %vm961, %v1037, %v1044
  %v1046 = vrot.slane %v1041, 4
  %v1048 = vshrl.u32 %v954, 16
  %v1050 = vrot.slane %v1048, 7
  %v1051 = vshll.u32 %v954, 16
  %v1053 = vor.u32 %v1050, %v1051
  %v1054 = vrot.slane %v1050, 4
  %v1056 = vshrl.u32 %v955, 16
  %v1058 = vrot.slane %v1056, 7
  %v1059 = vshll.u32 %v955, 16
  %v1061 = vor.u32 %v1058, %v1059
  %v1062 = vsel %vm961, %v1054, %v1061
  %v1063 = vrot.slane %v1058, 4
  %v1065 = vshrl.u32 %v956, 16
  %v1067 = vrot.slane %v1065, 7
  %v1068 = vshll.u32 %v956, 16
  %v1070 = vor.u32 %v1067, %v1068
  %v1071 = vrot.slane %v1067, 4
  %v1073 = vshrl.u32 %v957, 16
  %v1075 = vrot.slane %v1073, 7
  %v1076 = vshll.u32 %v957, 16
  %v1078 = vor.u32 %v1075, %v1076
  %v1079 = vsel %vm961, %v1071, %v1078
  %v1080 = vrot.slane %v1075, 4
  %v1082 = vshrl.u32 %v958, 16
  %v1084 = vrot.slane %v1082, 7
  %v1085 = vshll.u32 %v958, 16
  %v1087 = vor.u32 %v1084, %v1085
  %v1088 = vrot.slane %v1084, 4
  %v1090 = vshrl.u32 %v959, 16
  %v1092 = vrot.slane %v1090, 7
  %v1093 = vshll.u32 %v959, 16
  %v1095 = vor.u32 %v1092, %v1093
  %v1096 = vsel %vm961, %v1088, %v1095
  %v1097 = vrot.slane %v1092, 4
  %vm1122 = vcmask 1043456
  %vm1123 = vmand %vm1122, %vm915
  %vm1124 = vcmask 1047556
  %vm1125 = vmand %vm1124, %vm917
  %vm1126 = vmor %vm1125, %vm1123
  %v1127 = vld [vmem:[#allocation2] sm:$0xff]
  %v1128 = vsel %vm1126, %v968, %v1127
  %1129 = vst [vmem:[#allocation2] sm:$0xff] %v1128
  %1130 = vst [vmem:[#allocation2 + $0x8] sm:$0xff] %v977
  %v1131 = vld [vmem:[#allocation2 + $0x10] sm:$0x11]
  %v1132 = vsel %vm890, %v978, %v1131
  %1133 = vst [vmem:[#allocation2 + $0x10] sm:$0x11] %v1132
  %v1134 = vld [vmem:[#allocation2 + $0x18] sm:$0xff]
  %v1135 = vsel %vm1126, %v985, %v1134
  %1136 = vst [vmem:[#allocation2 + $0x18] sm:$0xff] %v1135
  %1137 = vst [vmem:[#allocation2 + $0x20] sm:$0xff] %v994
  %v1138 = vld [vmem:[#allocation2 + $0x28] sm:$0x11]
  %v1139 = vsel %vm890, %v995, %v1138
  %1140 = vst [vmem:[#allocation2 + $0x28] sm:$0x11] %v1139
  %v1141 = vld [vmem:[#allocation2 + $0x30] sm:$0xff]
  %v1142 = vsel %vm1126, %v1002, %v1141
  %1143 = vst [vmem:[#allocation2 + $0x30] sm:$0xff] %v1142
  %1144 = vst [vmem:[#allocation2 + $0x38] sm:$0xff] %v1011
  %v1145 = vld [vmem:[#allocation2 + $0x40] sm:$0x11]
  %v1146 = vsel %vm890, %v1012, %v1145
  %1147 = vst [vmem:[#allocation2 + $0x40] sm:$0x11] %v1146
  %v1148 = vld [vmem:[#allocation2 + $0x48] sm:$0xff]
  %v1149 = vsel %vm1126, %v1019, %v1148
  %1150 = vst [vmem:[#allocation2 + $0x48] sm:$0xff] %v1149
  %1151 = vst [vmem:[#allocation2 + $0x50] sm:$0xff] %v1028
  %v1152 = vld [vmem:[#allocation2 + $0x58] sm:$0x11]
  %v1153 = vsel %vm890, %v1029, %v1152
  %1154 = vst [vmem:[#allocation2 + $0x58] sm:$0x11] %v1153
  %v1155 = vld [vmem:[#allocation2 + $0x60] sm:$0xff]
  %v1156 = vsel %vm1126, %v1036, %v1155
  %1157 = vst [vmem:[#allocation2 + $0x60] sm:$0xff] %v1156
  %1158 = vst [vmem:[#allocation2 + $0x68] sm:$0xff] %v1045
  %v1159 = vld [vmem:[#allocation2 + $0x70] sm:$0x11]
  %v1160 = vsel %vm890, %v1046, %v1159
  %1161 = vst [vmem:[#allocation2 + $0x70] sm:$0x11] %v1160
  %v1162 = vld [vmem:[#allocation2 + $0x78] sm:$0xff]
  %v1163 = vsel %vm1126, %v1053, %v1162
  %1164 = vst [vmem:[#allocation2 + $0x78] sm:$0xff] %v1163
  %1165 = vst [vmem:[#allocation2 + $0x80] sm:$0xff] %v1062
  %v1166 = vld [vmem:[#allocation2 + $0x88] sm:$0x11]
  %v1167 = vsel %vm890, %v1063, %v1166
  %1168 = vst [vmem:[#allocation2 + $0x88] sm:$0x11] %v1167
  %v1169 = vld [vmem:[#allocation2 + $0x90] sm:$0xff]
  %v1170 = vsel %vm1126, %v1070, %v1169
  %1171 = vst [vmem:[#allocation2 + $0x90] sm:$0xff] %v1170
  %1172 = vst [vmem:[#allocation2 + $0x98] sm:$0xff] %v1079
  %v1173 = vld [vmem:[#allocation2 + $0xa0] sm:$0x11]
  %v1174 = vsel %vm890, %v1080, %v1173
  %1175 = vst [vmem:[#allocation2 + $0xa0] sm:$0x11] %v1174
  %v1176 = vld [vmem:[#allocation2 + $0xa8] sm:$0xff]
  %v1177 = vsel %vm1126, %v1087, %v1176
  %1178 = vst [vmem:[#allocation2 + $0xa8] sm:$0xff] %v1177
  %1179 = vst [vmem:[#allocation2 + $0xb0] sm:$0xff] %v1096
  %v1180 = vld [vmem:[#allocation2 + $0xb8] sm:$0x11]
  %v1181 = vsel %vm890, %v1097, %v1180
  %1182 = vst [vmem:[#allocation2 + $0xb8] sm:$0x11] %v1181
  %v1183 = vld [vmem:[%s4] sm:$0x3]
  %v1185 = vperm.slane %v1183, 0
  %v1186 = vperm.slane %v1183, 1
  %v1189 = vadd.f32 %v677, %v1185
  %v1190 = vadd.f32 %v775, %v1186
  %v1191 = vadd.f32 %v679, %v1185
  %v1192 = vadd.f32 %v777, %v1186
  %v1193 = vadd.f32 %v682, %v1185
  %v1194 = vadd.f32 %v780, %v1186
  %v1195 = vadd.f32 %v684, %v1185
  %v1196 = vadd.f32 %v782, %v1186
  %v1197 = vadd.f32 %v687, %v1185
  %v1198 = vadd.f32 %v785, %v1186
  %v1199 = vadd.f32 %v689, %v1185
  %v1200 = vadd.f32 %v787, %v1186
  %v1201 = vadd.f32 %v692, %v1185
  %v1202 = vadd.f32 %v790, %v1186
  %v1203 = vadd.f32 %v694, %v1185
  %v1204 = vadd.f32 %v792, %v1186
  %v1205 = vadd.f32 %v697, %v1185
  %v1206 = vadd.f32 %v795, %v1186
  %v1207 = vadd.f32 %v699, %v1185
  %v1208 = vadd.f32 %v797, %v1186
  %v1209 = vadd.f32 %v702, %v1185
  %v1210 = vadd.f32 %v800, %v1186
  %v1211 = vadd.f32 %v704, %v1185
  %v1212 = vadd.f32 %v802, %v1186
  %v1213 = vadd.f32 %v707, %v1185
  %v1214 = vadd.f32 %v805, %v1186
  %v1215 = vadd.f32 %v709, %v1185
  %v1216 = vadd.f32 %v807, %v1186
  %v1217 = vadd.f32 %v712, %v1185
  %v1218 = vadd.f32 %v810, %v1186
  %v1219 = vadd.f32 %v714, %v1185
  %v1220 = vadd.f32 %v812, %v1186
  %v1221 = vld [vmem:[#allocation2] sm:$0xff]
  %v1222 = vld [vmem:[#allocation2 + $0x8] sm:$0xff]
  %v1223 = vld [vmem:[#allocation2 + $0x18] sm:$0xff]
  %v1224 = vld [vmem:[#allocation2 + $0x20] sm:$0xff]
  %v1225 = vld [vmem:[#allocation2 + $0x30] sm:$0xff]
  %v1226 = vld [vmem:[#allocation2 + $0x38] sm:$0xff]
  %v1227 = vld [vmem:[#allocation2 + $0x48] sm:$0xff]
  %v1228 = vld [vmem:[#allocation2 + $0x50] sm:$0xff]
  %v1229 = vld [vmem:[#allocation2 + $0x60] sm:$0xff]
  %v1230 = vld [vmem:[#allocation2 + $0x68] sm:$0xff]
  %v1231 = vld [vmem:[#allocation2 + $0x78] sm:$0xff]
  %v1232 = vld [vmem:[#allocation2 + $0x80] sm:$0xff]
  %v1233 = vld [vmem:[#allocation2 + $0x90] sm:$0xff]
  %v1234 = vld [vmem:[#allocation2 + $0x98] sm:$0xff]
  %v1235 = vld [vmem:[#allocation2 + $0xa8] sm:$0xff]
  %v1236 = vld [vmem:[#allocation2 + $0xb0] sm:$0xff]
  %v1237 = vld [vmem:[%s3] sm:$0xff]
  %v1238 = vld [vmem:[%s3 + $0x8] sm:$0xff]
  %v1239 = vld [vmem:[%s3 + $0x10] sm:$0xff]
  %v1240 = vld [vmem:[%s3 + $0x18] sm:$0xff]
  %v1241 = vld [vmem:[%s3 + $0x20] sm:$0xff]
  %v1242 = vld [vmem:[%s3 + $0x28] sm:$0xff]
  %v1243 = vld [vmem:[%s3 + $0x30] sm:$0xff]
  %v1244 = vld [vmem:[%s3 + $0x38] sm:$0xff]
  %v1245 = vld [vmem:[%s3 + $0x40] sm:$0xff]
  %v1246 = vld [vmem:[%s3 + $0x48] sm:$0xff]
  %v1247 = vld [vmem:[%s3 + $0x50] sm:$0xff]
  %v1248 = vld [vmem:[%s3 + $0x58] sm:$0xff]
  %v1249 = vld [vmem:[%s3 + $0x60] sm:$0xff]
  %v1250 = vld [vmem:[%s3 + $0x68] sm:$0xff]
  %v1251 = vld [vmem:[%s3 + $0x70] sm:$0xff]
  %v1252 = vld [vmem:[%s3 + $0x78] sm:$0xff]
  %v1253 = vld [vmem:[%s3 + $0x80] sm:$0xff]
  %v1254 = vld [vmem:[%s3 + $0x88] sm:$0xff]
  %v1255 = vld [vmem:[%s3 + $0x90] sm:$0xff]
  %v1256 = vld [vmem:[%s3 + $0x98] sm:$0xff]
  %v1257 = vld [vmem:[%s3 + $0xa0] sm:$0xff]
  %v1258 = vld [vmem:[%s3 + $0xa8] sm:$0xff]
  %v1259 = vld [vmem:[%s3 + $0xb0] sm:$0xff]
  %v1260 = vld [vmem:[%s3 + $0xb8] sm:$0xff]
  %v1261 = vld [vmem:[%s3 + $0xc0] sm:$0xff]
  %v1262 = vld [vmem:[%s3 + $0xc8] sm:$0xff]
  %v1263 = vld [vmem:[%s3 + $0xd0] sm:$0xff]
  %v1264 = vld [vmem:[%s3 + $0xd8] sm:$0xff]
  %v1265 = vld [vmem:[%s3 + $0xe0] sm:$0xff]
  %v1266 = vld [vmem:[%s3 + $0xe8] sm:$0xff]
  %v1267 = vld [vmem:[%s3 + $0xf0] sm:$0xff]
  %v1268 = vld [vmem:[%s3 + $0xf8] sm:$0xff]
  %v1285 = vunpack.c.l.b16 %v1221
  %v1286 = vunpack.c.h.b16 %v1221
  %v1287 = vunpack.c.l.b16 %v1222
  %v1288 = vunpack.c.h.b16 %v1222
  %v1289 = vunpack.c.l.b16 %v1223
  %v1290 = vunpack.c.h.b16 %v1223
  %v1291 = vunpack.c.l.b16 %v1224
  %v1292 = vunpack.c.h.b16 %v1224
  %v1293 = vunpack.c.l.b16 %v1225
  %v1294 = vunpack.c.h.b16 %v1225
  %v1295 = vunpack.c.l.b16 %v1226
  %v1296 = vunpack.c.h.b16 %v1226
  %v1297 = vunpack.c.l.b16 %v1227
  %v1298 = vunpack.c.h.b16 %v1227
  %v1299 = vunpack.c.l.b16 %v1228
  %v1300 = vunpack.c.h.b16 %v1228
  %v1301 = vunpack.c.l.b16 %v1229
  %v1302 = vunpack.c.h.b16 %v1229
  %v1303 = vunpack.c.l.b16 %v1230
  %v1304 = vunpack.c.h.b16 %v1230
  %v1305 = vunpack.c.l.b16 %v1231
  %v1306 = vunpack.c.h.b16 %v1231
  %v1307 = vunpack.c.l.b16 %v1232
  %v1308 = vunpack.c.h.b16 %v1232
  %v1309 = vunpack.c.l.b16 %v1233
  %v1310 = vunpack.c.h.b16 %v1233
  %v1311 = vunpack.c.l.b16 %v1234
  %v1312 = vunpack.c.h.b16 %v1234
  %v1313 = vunpack.c.l.b16 %v1235
  %v1314 = vunpack.c.h.b16 %v1235
  %v1315 = vunpack.c.l.b16 %v1236
  %v1316 = vunpack.c.h.b16 %v1236
  %v1317 = vpack.c.b16 %v1287, %v1285
  %v1318 = vpack.c.b16 %v1288, %v1286
  %v1319 = vpack.c.b16 %v1291, %v1289
  %v1320 = vpack.c.b16 %v1292, %v1290
  %v1321 = vpack.c.b16 %v1295, %v1293
  %v1322 = vpack.c.b16 %v1296, %v1294
  %v1323 = vpack.c.b16 %v1299, %v1297
  %v1324 = vpack.c.b16 %v1300, %v1298
  %v1325 = vpack.c.b16 %v1303, %v1301
  %v1326 = vpack.c.b16 %v1304, %v1302
  %v1327 = vpack.c.b16 %v1307, %v1305
  %v1328 = vpack.c.b16 %v1308, %v1306
  %v1329 = vpack.c.b16 %v1311, %v1309
  %v1330 = vpack.c.b16 %v1312, %v1310
  %v1331 = vpack.c.b16 %v1315, %v1313
  %v1332 = vpack.c.b16 %v1316, %v1314
  %v1381 = vunpack.c.l.b16 %v1237
  %v1382 = vunpack.c.h.b16 %v1237
  %v1383 = vunpack.c.l.b16 %v1238
  %v1384 = vunpack.c.h.b16 %v1238
  %v1385 = vunpack.c.l.b16 %v1239
  %v1386 = vunpack.c.h.b16 %v1239
  %v1387 = vunpack.c.l.b16 %v1240
  %v1388 = vunpack.c.h.b16 %v1240
  %v1389 = vunpack.c.l.b16 %v1241
  %v1390 = vunpack.c.h.b16 %v1241
  %v1391 = vunpack.c.l.b16 %v1242
  %v1392 = vunpack.c.h.b16 %v1242
  %v1393 = vunpack.c.l.b16 %v1243
  %v1394 = vunpack.c.h.b16 %v1243
  %v1395 = vunpack.c.l.b16 %v1244
  %v1396 = vunpack.c.h.b16 %v1244
  %v1397 = vunpack.c.l.b16 %v1245
  %v1398 = vunpack.c.h.b16 %v1245
  %v1399 = vunpack.c.l.b16 %v1246
  %v1400 = vunpack.c.h.b16 %v1246
  %v1401 = vunpack.c.l.b16 %v1247
  %v1402 = vunpack.c.h.b16 %v1247
  %v1403 = vunpack.c.l.b16 %v1248
  %v1404 = vunpack.c.h.b16 %v1248
  %v1405 = vunpack.c.l.b16 %v1249
  %v1406 = vunpack.c.h.b16 %v1249
  %v1407 = vunpack.c.l.b16 %v1250
  %v1408 = vunpack.c.h.b16 %v1250
  %v1409 = vunpack.c.l.b16 %v1251
  %v1410 = vunpack.c.h.b16 %v1251
  %v1411 = vunpack.c.l.b16 %v1252
  %v1412 = vunpack.c.h.b16 %v1252
  %v1413 = vunpack.c.l.b16 %v1253
  %v1414 = vunpack.c.h.b16 %v1253
  %v1415 = vunpack.c.l.b16 %v1254
  %v1416 = vunpack.c.h.b16 %v1254
  %v1417 = vunpack.c.l.b16 %v1255
  %v1418 = vunpack.c.h.b16 %v1255
  %v1419 = vunpack.c.l.b16 %v1256
  %v1420 = vunpack.c.h.b16 %v1256
  %v1421 = vunpack.c.l.b16 %v1257
  %v1422 = vunpack.c.h.b16 %v1257
  %v1423 = vunpack.c.l.b16 %v1258
  %v1424 = vunpack.c.h.b16 %v1258
  %v1425 = vunpack.c.l.b16 %v1259
  %v1426 = vunpack.c.h.b16 %v1259
  %v1427 = vunpack.c.l.b16 %v1260
  %v1428 = vunpack.c.h.b16 %v1260
  %v1429 = vunpack.c.l.b16 %v1261
  %v1430 = vunpack.c.h.b16 %v1261
  %v1431 = vunpack.c.l.b16 %v1262
  %v1432 = vunpack.c.h.b16 %v1262
  %v1433 = vunpack.c.l.b16 %v1263
  %v1434 = vunpack.c.h.b16 %v1263
  %v1435 = vunpack.c.l.b16 %v1264
  %v1436 = vunpack.c.h.b16 %v1264
  %v1437 = vunpack.c.l.b16 %v1265
  %v1438 = vunpack.c.h.b16 %v1265
  %v1439 = vunpack.c.l.b16 %v1266
  %v1440 = vunpack.c.h.b16 %v1266
  %v1441 = vunpack.c.l.b16 %v1267
  %v1442 = vunpack.c.h.b16 %v1267
  %v1443 = vunpack.c.l.b16 %v1268
  %v1444 = vunpack.c.h.b16 %v1268
  %v1445 = vpack.c.b16 %v1383, %v1381
  %v1446 = vpack.c.b16 %v1384, %v1382
  %v1447 = vpack.c.b16 %v1387, %v1385
  %v1448 = vpack.c.b16 %v1388, %v1386
  %v1449 = vpack.c.b16 %v1391, %v1389
  %v1450 = vpack.c.b16 %v1392, %v1390
  %v1451 = vpack.c.b16 %v1395, %v1393
  %v1452 = vpack.c.b16 %v1396, %v1394
  %v1453 = vpack.c.b16 %v1399, %v1397
  %v1454 = vpack.c.b16 %v1400, %v1398
  %v1455 = vpack.c.b16 %v1403, %v1401
  %v1456 = vpack.c.b16 %v1404, %v1402
  %v1457 = vpack.c.b16 %v1407, %v1405
  %v1458 = vpack.c.b16 %v1408, %v1406
  %v1459 = vpack.c.b16 %v1411, %v1409
  %v1460 = vpack.c.b16 %v1412, %v1410
  %v1461 = vpack.c.b16 %v1415, %v1413
  %v1462 = vpack.c.b16 %v1416, %v1414
  %v1463 = vpack.c.b16 %v1419, %v1417
  %v1464 = vpack.c.b16 %v1420, %v1418
  %v1465 = vpack.c.b16 %v1423, %v1421
  %v1466 = vpack.c.b16 %v1424, %v1422
  %v1467 = vpack.c.b16 %v1427, %v1425
  %v1468 = vpack.c.b16 %v1428, %v1426
  %v1469 = vpack.c.b16 %v1431, %v1429
  %v1470 = vpack.c.b16 %v1432, %v1430
  %v1471 = vpack.c.b16 %v1435, %v1433
  %v1472 = vpack.c.b16 %v1436, %v1434
  %v1473 = vpack.c.b16 %v1439, %v1437
  %v1474 = vpack.c.b16 %v1440, %v1438
  %v1475 = vpack.c.b16 %v1443, %v1441
  %v1476 = vpack.c.b16 %v1444, %v1442
  %1509 = vmatpush.bf16.msra.mxu0 %v1459
  %1510 = vmatpush.bf16.msra.mxu0 %v1457
  %1511 = vmatpush.bf16.msra.mxu0 %v1455
  %1512 = vmatpush.bf16.msra.mxu0 %v1453
  %1513 = vmatpush.bf16.msra.mxu0 %v1451
  %1514 = vmatpush.bf16.msra.mxu0 %v1449
  %1515 = vmatpush.bf16.msra.mxu0 %v1447
  %1516 = vmatpush.bf16.msra.mxu0 %v1445
  %1517 = vmatmul.bf16.gmra.mxu0 %v1317
  %v1518 = vpop.f32.mrf.mxu0
  %v1519 = vadd.f32 0.0, %v1518
  %v1520 = vpop.f32.mrf.mxu0
  %v1521 = vadd.f32 0.0, %v1520
  %1522 = vmatmul.bf16.gmra.mxu0 %v1319
  %v1523 = vpop.f32.mrf.mxu0
  %v1524 = vadd.f32 0.0, %v1523
  %v1525 = vpop.f32.mrf.mxu0
  %v1526 = vadd.f32 0.0, %v1525
  %1527 = vmatmul.bf16.gmra.mxu0 %v1321
  %v1528 = vpop.f32.mrf.mxu0
  %v1529 = vadd.f32 0.0, %v1528
  %v1530 = vpop.f32.mrf.mxu0
  %v1531 = vadd.f32 0.0, %v1530
  %1532 = vmatmul.bf16.gmra.mxu0 %v1323
  %v1533 = vpop.f32.mrf.mxu0
  %v1534 = vadd.f32 0.0, %v1533
  %v1535 = vpop.f32.mrf.mxu0
  %v1536 = vadd.f32 0.0, %v1535
  %1537 = vmatmul.bf16.gmra.mxu0 %v1325
  %v1538 = vpop.f32.mrf.mxu0
  %v1539 = vadd.f32 0.0, %v1538
  %v1540 = vpop.f32.mrf.mxu0
  %v1541 = vadd.f32 0.0, %v1540
  %1542 = vmatmul.bf16.gmra.mxu0 %v1327
  %v1543 = vpop.f32.mrf.mxu0
  %v1544 = vadd.f32 0.0, %v1543
  %v1545 = vpop.f32.mrf.mxu0
  %v1546 = vadd.f32 0.0, %v1545
  %1547 = vmatmul.bf16.gmra.mxu0 %v1329
  %v1548 = vpop.f32.mrf.mxu0
  %v1549 = vadd.f32 0.0, %v1548
  %v1550 = vpop.f32.mrf.mxu0
  %v1551 = vadd.f32 0.0, %v1550
  %1552 = vmatmul.bf16.gmra.mxu0 %v1331
  %v1553 = vpop.f32.mrf.mxu0
  %v1554 = vadd.f32 0.0, %v1553
  %v1555 = vpop.f32.mrf.mxu0
  %v1556 = vadd.f32 0.0, %v1555
  %1557 = vdwg.mxu0
  %1558 = vmatpush.bf16.msra.mxu0 %v1475
  %1559 = vmatpush.bf16.msra.mxu0 %v1473
  %1560 = vmatpush.bf16.msra.mxu0 %v1471
  %1561 = vmatpush.bf16.msra.mxu0 %v1469
  %1562 = vmatpush.bf16.msra.mxu0 %v1467
  %1563 = vmatpush.bf16.msra.mxu0 %v1465
  %1564 = vmatpush.bf16.msra.mxu0 %v1463
  %1565 = vmatpush.bf16.msra.mxu0 %v1461
  %1566 = vmatmul.bf16.gmra.mxu0 %v1318
  %v1567 = vpop.f32.mrf.mxu0
  %v1568 = vadd.f32 %v1519, %v1567
  %v1569 = vpop.f32.mrf.mxu0
  %v1570 = vadd.f32 %v1521, %v1569
  %1571 = vmatmul.bf16.gmra.mxu0 %v1320
  %v1572 = vpop.f32.mrf.mxu0
  %v1573 = vadd.f32 %v1524, %v1572
  %v1574 = vpop.f32.mrf.mxu0
  %v1575 = vadd.f32 %v1526, %v1574
  %1576 = vmatmul.bf16.gmra.mxu0 %v1322
  %v1577 = vpop.f32.mrf.mxu0
  %v1578 = vadd.f32 %v1529, %v1577
  %v1579 = vpop.f32.mrf.mxu0
  %v1580 = vadd.f32 %v1531, %v1579
  %1581 = vmatmul.bf16.gmra.mxu0 %v1324
  %v1582 = vpop.f32.mrf.mxu0
  %v1583 = vadd.f32 %v1534, %v1582
  %v1584 = vpop.f32.mrf.mxu0
  %v1585 = vadd.f32 %v1536, %v1584
  %1586 = vmatmul.bf16.gmra.mxu0 %v1326
  %v1587 = vpop.f32.mrf.mxu0
  %v1588 = vadd.f32 %v1539, %v1587
  %v1589 = vpop.f32.mrf.mxu0
  %v1590 = vadd.f32 %v1541, %v1589
  %1591 = vmatmul.bf16.gmra.mxu0 %v1328
  %v1592 = vpop.f32.mrf.mxu0
  %v1593 = vadd.f32 %v1544, %v1592
  %v1594 = vpop.f32.mrf.mxu0
  %v1595 = vadd.f32 %v1546, %v1594
  %1596 = vmatmul.bf16.gmra.mxu0 %v1330
  %v1597 = vpop.f32.mrf.mxu0
  %v1598 = vadd.f32 %v1549, %v1597
  %v1599 = vpop.f32.mrf.mxu0
  %v1600 = vadd.f32 %v1551, %v1599
  %1601 = vmatmul.bf16.gmra.mxu0 %v1332
  %v1602 = vpop.f32.mrf.mxu0
  %v1603 = vadd.f32 %v1554, %v1602
  %v1604 = vpop.f32.mrf.mxu0
  %v1605 = vadd.f32 %v1556, %v1604
  %1606 = vdwg.mxu0
  %1607 = vmatpush.bf16.msra.mxu0 %v1460
  %1608 = vmatpush.bf16.msra.mxu0 %v1458
  %1609 = vmatpush.bf16.msra.mxu0 %v1456
  %1610 = vmatpush.bf16.msra.mxu0 %v1454
  %1611 = vmatpush.bf16.msra.mxu0 %v1452
  %1612 = vmatpush.bf16.msra.mxu0 %v1450
  %1613 = vmatpush.bf16.msra.mxu0 %v1448
  %1614 = vmatpush.bf16.msra.mxu0 %v1446
  %1615 = vmatmul.bf16.gmra.mxu0 %v1317
  %v1616 = vpop.f32.mrf.mxu0
  %v1617 = vadd.f32 0.0, %v1616
  %v1618 = vpop.f32.mrf.mxu0
  %v1619 = vadd.f32 0.0, %v1618
  %1620 = vmatmul.bf16.gmra.mxu0 %v1319
  %v1621 = vpop.f32.mrf.mxu0
  %v1622 = vadd.f32 0.0, %v1621
  %v1623 = vpop.f32.mrf.mxu0
  %v1624 = vadd.f32 0.0, %v1623
  %1625 = vmatmul.bf16.gmra.mxu0 %v1321
  %v1626 = vpop.f32.mrf.mxu0
  %v1627 = vadd.f32 0.0, %v1626
  %v1628 = vpop.f32.mrf.mxu0
  %v1629 = vadd.f32 0.0, %v1628
  %1630 = vmatmul.bf16.gmra.mxu0 %v1323
  %v1631 = vpop.f32.mrf.mxu0
  %v1632 = vadd.f32 0.0, %v1631
  %v1633 = vpop.f32.mrf.mxu0
  %v1634 = vadd.f32 0.0, %v1633
  %1635 = vmatmul.bf16.gmra.mxu0 %v1325
  %v1636 = vpop.f32.mrf.mxu0
  %v1637 = vadd.f32 0.0, %v1636
  %v1638 = vpop.f32.mrf.mxu0
  %v1639 = vadd.f32 0.0, %v1638
  %1640 = vmatmul.bf16.gmra.mxu0 %v1327
  %v1641 = vpop.f32.mrf.mxu0
  %v1642 = vadd.f32 0.0, %v1641
  %v1643 = vpop.f32.mrf.mxu0
  %v1644 = vadd.f32 0.0, %v1643
  %1645 = vmatmul.bf16.gmra.mxu0 %v1329
  %v1646 = vpop.f32.mrf.mxu0
  %v1647 = vadd.f32 0.0, %v1646
  %v1648 = vpop.f32.mrf.mxu0
  %v1649 = vadd.f32 0.0, %v1648
  %1650 = vmatmul.bf16.gmra.mxu0 %v1331
  %v1651 = vpop.f32.mrf.mxu0
  %v1652 = vadd.f32 0.0, %v1651
  %v1653 = vpop.f32.mrf.mxu0
  %v1654 = vadd.f32 0.0, %v1653
  %1655 = vdwg.mxu0
  %1656 = vmatpush.bf16.msra.mxu0 %v1476
  %1657 = vmatpush.bf16.msra.mxu0 %v1474
  %1658 = vmatpush.bf16.msra.mxu0 %v1472
  %1659 = vmatpush.bf16.msra.mxu0 %v1470
  %1660 = vmatpush.bf16.msra.mxu0 %v1468
  %1661 = vmatpush.bf16.msra.mxu0 %v1466
  %1662 = vmatpush.bf16.msra.mxu0 %v1464
  %1663 = vmatpush.bf16.msra.mxu0 %v1462
  %1664 = vmatmul.bf16.gmra.mxu0 %v1318
  %v1665 = vpop.f32.mrf.mxu0
  %v1666 = vadd.f32 %v1617, %v1665
  %v1667 = vpop.f32.mrf.mxu0
  %v1668 = vadd.f32 %v1619, %v1667
  %1669 = vmatmul.bf16.gmra.mxu0 %v1320
  %v1670 = vpop.f32.mrf.mxu0
  %v1671 = vadd.f32 %v1622, %v1670
  %v1672 = vpop.f32.mrf.mxu0
  %v1673 = vadd.f32 %v1624, %v1672
  %1674 = vmatmul.bf16.gmra.mxu0 %v1322
  %v1675 = vpop.f32.mrf.mxu0
  %v1676 = vadd.f32 %v1627, %v1675
  %v1677 = vpop.f32.mrf.mxu0
  %v1678 = vadd.f32 %v1629, %v1677
  %1679 = vmatmul.bf16.gmra.mxu0 %v1324
  %v1680 = vpop.f32.mrf.mxu0
  %v1681 = vadd.f32 %v1632, %v1680
  %v1682 = vpop.f32.mrf.mxu0
  %v1683 = vadd.f32 %v1634, %v1682
  %1684 = vmatmul.bf16.gmra.mxu0 %v1326
  %v1685 = vpop.f32.mrf.mxu0
  %v1686 = vadd.f32 %v1637, %v1685
  %v1687 = vpop.f32.mrf.mxu0
  %v1688 = vadd.f32 %v1639, %v1687
  %1689 = vmatmul.bf16.gmra.mxu0 %v1328
  %v1690 = vpop.f32.mrf.mxu0
  %v1691 = vadd.f32 %v1642, %v1690
  %v1692 = vpop.f32.mrf.mxu0
  %v1693 = vadd.f32 %v1644, %v1692
  %1694 = vmatmul.bf16.gmra.mxu0 %v1330
  %v1695 = vpop.f32.mrf.mxu0
  %v1696 = vadd.f32 %v1647, %v1695
  %v1697 = vpop.f32.mrf.mxu0
  %v1698 = vadd.f32 %v1649, %v1697
  %1699 = vmatmul.bf16.gmra.mxu0 %v1332
  %v1700 = vpop.f32.mrf.mxu0
  %v1701 = vadd.f32 %v1652, %v1700
  %v1702 = vpop.f32.mrf.mxu0
  %v1703 = vadd.f32 %v1654, %v1702
  %1704 = vdwg.mxu0
  %v1705 = vadd.f32 %v1189, %v1568
  %v1706 = vadd.f32 %v1190, %v1666
  %v1707 = vadd.f32 %v1191, %v1570
  %v1708 = vadd.f32 %v1192, %v1668
  %v1709 = vadd.f32 %v1193, %v1573
  %v1710 = vadd.f32 %v1194, %v1671
  %v1711 = vadd.f32 %v1195, %v1575
  %v1712 = vadd.f32 %v1196, %v1673
  %v1713 = vadd.f32 %v1197, %v1578
  %v1714 = vadd.f32 %v1198, %v1676
  %v1715 = vadd.f32 %v1199, %v1580
  %v1716 = vadd.f32 %v1200, %v1678
  %v1717 = vadd.f32 %v1201, %v1583
  %v1718 = vadd.f32 %v1202, %v1681
  %v1719 = vadd.f32 %v1203, %v1585
  %v1720 = vadd.f32 %v1204, %v1683
  %v1721 = vadd.f32 %v1205, %v1588
  %v1722 = vadd.f32 %v1206, %v1686
  %v1723 = vadd.f32 %v1207, %v1590
  %v1724 = vadd.f32 %v1208, %v1688
  %v1725 = vadd.f32 %v1209, %v1593
  %v1726 = vadd.f32 %v1210, %v1691
  %v1727 = vadd.f32 %v1211, %v1595
  %v1728 = vadd.f32 %v1212, %v1693
  %v1729 = vadd.f32 %v1213, %v1598
  %v1730 = vadd.f32 %v1214, %v1696
  %v1731 = vadd.f32 %v1215, %v1600
  %v1732 = vadd.f32 %v1216, %v1698
  %v1733 = vadd.f32 %v1217, %v1603
  %v1734 = vadd.f32 %v1218, %v1701
  %v1735 = vadd.f32 %v1219, %v1605
  %v1736 = vadd.f32 %v1220, %v1703
  %v1737 = vld [vmem:[#allocation2] sm:$0xff]
  %v1738 = vld [vmem:[#allocation2 + $0x8] sm:$0xff]
  %v1739 = vld [vmem:[#allocation2 + $0x10] sm:$0x11]
  %v1740 = vld [vmem:[#allocation2 + $0x18] sm:$0xff]
  %v1741 = vld [vmem:[#allocation2 + $0x20] sm:$0xff]
  %v1742 = vld [vmem:[#allocation2 + $0x28] sm:$0x11]
  %v1743 = vld [vmem:[#allocation2 + $0x30] sm:$0xff]
  %v1744 = vld [vmem:[#allocation2 + $0x38] sm:$0xff]
  %v1745 = vld [vmem:[#allocation2 + $0x40] sm:$0x11]
  %v1746 = vld [vmem:[#allocation2 + $0x48] sm:$0xff]
  %v1747 = vld [vmem:[#allocation2 + $0x50] sm:$0xff]
  %v1748 = vld [vmem:[#allocation2 + $0x58] sm:$0x11]
  %v1749 = vld [vmem:[#allocation2 + $0x60] sm:$0xff]
  %v1750 = vld [vmem:[#allocation2 + $0x68] sm:$0xff]
  %v1751 = vld [vmem:[#allocation2 + $0x70] sm:$0x11]
  %v1752 = vld [vmem:[#allocation2 + $0x78] sm:$0xff]
  %v1753 = vld [vmem:[#allocation2 + $0x80] sm:$0xff]
  %v1754 = vld [vmem:[#allocation2 + $0x88] sm:$0x11]
  %v1755 = vld [vmem:[#allocation2 + $0x90] sm:$0xff]
  %v1756 = vld [vmem:[#allocation2 + $0x98] sm:$0xff]
  %v1757 = vld [vmem:[#allocation2 + $0xa0] sm:$0x11]
  %v1758 = vld [vmem:[#allocation2 + $0xa8] sm:$0xff]
  %v1759 = vld [vmem:[#allocation2 + $0xb0] sm:$0xff]
  %v1760 = vld [vmem:[#allocation2 + $0xb8] sm:$0x11]
  %vm1761 = vsmask.f32 3328
  %vm1762 = vsmask.f32 7440
  %vm1763 = vmor %vm1761, %vm1762
  %v1765 = vshrl.u32 %v1737, 16
  %v1767 = vrot.slane %v1765, 4
  %v1768 = vshll.u32 %v1737, 16
  %v1770 = vrot.slane %v1768, 5
  %v1771 = vor.u32 %v1767, %v1770
  %v1772 = vrot.slane %v1771, 4
  %v1774 = vshll.u32 %v1738, 16
  %v1776 = vrot.slane %v1774, 5
  %v1777 = vsel %vm1763, %v1772, %v1776
  %v1778 = vshrl.u32 %v1738, 16
  %v1780 = vrot.slane %v1778, 4
  %v1781 = vor.u32 %v1780, %v1776
  %v1782 = vrot.slane %v1781, 4
  %v1784 = vshll.u32 %v1739, 16
  %v1786 = vrot.slane %v1784, 5
  %v1787 = vsel %vm1763, %v1782, %v1786
  %v1789 = vshrl.u32 %v1740, 16
  %v1791 = vrot.slane %v1789, 4
  %v1792 = vshll.u32 %v1740, 16
  %v1794 = vrot.slane %v1792, 5
  %v1795 = vor.u32 %v1791, %v1794
  %v1796 = vrot.slane %v1795, 4
  %v1798 = vshll.u32 %v1741, 16
  %v1800 = vrot.slane %v1798, 5
  %v1801 = vsel %vm1763, %v1796, %v1800
  %v1802 = vshrl.u32 %v1741, 16
  %v1804 = vrot.slane %v1802, 4
  %v1805 = vor.u32 %v1804, %v1800
  %v1806 = vrot.slane %v1805, 4
  %v1808 = vshll.u32 %v1742, 16
  %v1810 = vrot.slane %v1808, 5
  %v1811 = vsel %vm1763, %v1806, %v1810
  %v1813 = vshrl.u32 %v1743, 16
  %v1815 = vrot.slane %v1813, 4
  %v1816 = vshll.u32 %v1743, 16
  %v1818 = vrot.slane %v1816, 5
  %v1819 = vor.u32 %v1815, %v1818
  %v1820 = vrot.slane %v1819, 4
  %v1822 = vshll.u32 %v1744, 16
  %v1824 = vrot.slane %v1822, 5
  %v1825 = vsel %vm1763, %v1820, %v1824
  %v1826 = vshrl.u32 %v1744, 16
  %v1828 = vrot.slane %v1826, 4
  %v1829 = vor.u32 %v1828, %v1824
  %v1830 = vrot.slane %v1829, 4
  %v1832 = vshll.u32 %v1745, 16
  %v1834 = vrot.slane %v1832, 5
  %v1835 = vsel %vm1763, %v1830, %v1834
  %v1837 = vshrl.u32 %v1746, 16
  %v1839 = vrot.slane %v1837, 4
  %v1840 = vshll.u32 %v1746, 16
  %v1842 = vrot.slane %v1840, 5
  %v1843 = vor.u32 %v1839, %v1842
  %v1844 = vrot.slane %v1843, 4
  %v1846 = vshll.u32 %v1747, 16
  %v1848 = vrot.slane %v1846, 5
  %v1849 = vsel %vm1763, %v1844, %v1848
  %v1850 = vshrl.u32 %v1747, 16
  %v1852 = vrot.slane %v1850, 4
  %v1853 = vor.u32 %v1852, %v1848
  %v1854 = vrot.slane %v1853, 4
  %v1856 = vshll.u32 %v1748, 16
  %v1858 = vrot.slane %v1856, 5
  %v1859 = vsel %vm1763, %v1854, %v1858
  %v1861 = vshrl.u32 %v1749, 16
  %v1863 = vrot.slane %v1861, 4
  %v1864 = vshll.u32 %v1749, 16
  %v1866 = vrot.slane %v1864, 5
  %v1867 = vor.u32 %v1863, %v1866
  %v1868 = vrot.slane %v1867, 4
  %v1870 = vshll.u32 %v1750, 16
  %v1872 = vrot.slane %v1870, 5
  %v1873 = vsel %vm1763, %v1868, %v1872
  %v1874 = vshrl.u32 %v1750, 16
  %v1876 = vrot.slane %v1874, 4
  %v1877 = vor.u32 %v1876, %v1872
  %v1878 = vrot.slane %v1877, 4
  %v1880 = vshll.u32 %v1751, 16
  %v1882 = vrot.slane %v1880, 5
  %v1883 = vsel %vm1763, %v1878, %v1882
  %v1885 = vshrl.u32 %v1752, 16
  %v1887 = vrot.slane %v1885, 4
  %v1888 = vshll.u32 %v1752, 16
  %v1890 = vrot.slane %v1888, 5
  %v1891 = vor.u32 %v1887, %v1890
  %v1892 = vrot.slane %v1891, 4
  %v1894 = vshll.u32 %v1753, 16
  %v1896 = vrot.slane %v1894, 5
  %v1897 = vsel %vm1763, %v1892, %v1896
  %v1898 = vshrl.u32 %v1753, 16
  %v1900 = vrot.slane %v1898, 4
  %v1901 = vor.u32 %v1900, %v1896
  %v1902 = vrot.slane %v1901, 4
  %v1904 = vshll.u32 %v1754, 16
  %v1906 = vrot.slane %v1904, 5
  %v1907 = vsel %vm1763, %v1902, %v1906
  %v1909 = vshrl.u32 %v1755, 16
  %v1911 = vrot.slane %v1909, 4
  %v1912 = vshll.u32 %v1755, 16
  %v1914 = vrot.slane %v1912, 5
  %v1915 = vor.u32 %v1911, %v1914
  %v1916 = vrot.slane %v1915, 4
  %v1918 = vshll.u32 %v1756, 16
  %v1920 = vrot.slane %v1918, 5
  %v1921 = vsel %vm1763, %v1916, %v1920
  %v1922 = vshrl.u32 %v1756, 16
  %v1924 = vrot.slane %v1922, 4
  %v1925 = vor.u32 %v1924, %v1920
  %v1926 = vrot.slane %v1925, 4
  %v1928 = vshll.u32 %v1757, 16
  %v1930 = vrot.slane %v1928, 5
  %v1931 = vsel %vm1763, %v1926, %v1930
  %v1933 = vshrl.u32 %v1758, 16
  %v1935 = vrot.slane %v1933, 4
  %v1936 = vshll.u32 %v1758, 16
  %v1938 = vrot.slane %v1936, 5
  %v1939 = vor.u32 %v1935, %v1938
  %v1940 = vrot.slane %v1939, 4
  %v1942 = vshll.u32 %v1759, 16
  %v1944 = vrot.slane %v1942, 5
  %v1945 = vsel %vm1763, %v1940, %v1944
  %v1946 = vshrl.u32 %v1759, 16
  %v1948 = vrot.slane %v1946, 4
  %v1949 = vor.u32 %v1948, %v1944
  %v1950 = vrot.slane %v1949, 4
  %v1952 = vshll.u32 %v1760, 16
  %v1954 = vrot.slane %v1952, 5
  %v1955 = vsel %vm1763, %v1950, %v1954
  %s1956 = scalar_lea.vmem %s3, 256
  %v1957 = vld [vmem:[%s1956] sm:$0xff]
  %v1958 = vld [vmem:[%s1956 + $0x8] sm:$0xff]
  %v1959 = vld [vmem:[%s1956 + $0x10] sm:$0xff]
  %v1960 = vld [vmem:[%s1956 + $0x18] sm:$0xff]
  %v1961 = vld [vmem:[%s1956 + $0x20] sm:$0xff]
  %v1962 = vld [vmem:[%s1956 + $0x28] sm:$0xff]
  %v1963 = vld [vmem:[%s1956 + $0x30] sm:$0xff]
  %v1964 = vld [vmem:[%s1956 + $0x38] sm:$0xff]
  %v1965 = vld [vmem:[%s1956 + $0x40] sm:$0xff]
  %v1966 = vld [vmem:[%s1956 + $0x48] sm:$0xff]
  %v1967 = vld [vmem:[%s1956 + $0x50] sm:$0xff]
  %v1968 = vld [vmem:[%s1956 + $0x58] sm:$0xff]
  %v1969 = vld [vmem:[%s1956 + $0x60] sm:$0xff]
  %v1970 = vld [vmem:[%s1956 + $0x68] sm:$0xff]
  %v1971 = vld [vmem:[%s1956 + $0x70] sm:$0xff]
  %v1972 = vld [vmem:[%s1956 + $0x78] sm:$0xff]
  %v1973 = vld [vmem:[%s1956 + $0x80] sm:$0xff]
  %v1974 = vld [vmem:[%s1956 + $0x88] sm:$0xff]
  %v1975 = vld [vmem:[%s1956 + $0x90] sm:$0xff]
  %v1976 = vld [vmem:[%s1956 + $0x98] sm:$0xff]
  %v1977 = vld [vmem:[%s1956 + $0xa0] sm:$0xff]
  %v1978 = vld [vmem:[%s1956 + $0xa8] sm:$0xff]
  %v1979 = vld [vmem:[%s1956 + $0xb0] sm:$0xff]
  %v1980 = vld [vmem:[%s1956 + $0xb8] sm:$0xff]
  %v1981 = vld [vmem:[%s1956 + $0xc0] sm:$0xff]
  %v1982 = vld [vmem:[%s1956 + $0xc8] sm:$0xff]
  %v1983 = vld [vmem:[%s1956 + $0xd0] sm:$0xff]
  %v1984 = vld [vmem:[%s1956 + $0xd8] sm:$0xff]
  %v1985 = vld [vmem:[%s1956 + $0xe0] sm:$0xff]
  %v1986 = vld [vmem:[%s1956 + $0xe8] sm:$0xff]
  %v1987 = vld [vmem:[%s1956 + $0xf0] sm:$0xff]
  %v1988 = vld [vmem:[%s1956 + $0xf8] sm:$0xff]
  %v1989 = vunpack.c.l.b16 %v1777
  %v1990 = vunpack.c.h.b16 %v1777
  %v1991 = vunpack.c.l.b16 %v1787
  %v1992 = vunpack.c.h.b16 %v1787
  %v1993 = vunpack.c.l.b16 %v1801
  %v1994 = vunpack.c.h.b16 %v1801
  %v1995 = vunpack.c.l.b16 %v1811
  %v1996 = vunpack.c.h.b16 %v1811
  %v1997 = vunpack.c.l.b16 %v1825
  %v1998 = vunpack.c.h.b16 %v1825
  %v1999 = vunpack.c.l.b16 %v1835
  %v2000 = vunpack.c.h.b16 %v1835
  %v2001 = vunpack.c.l.b16 %v1849
  %v2002 = vunpack.c.h.b16 %v1849
  %v2003 = vunpack.c.l.b16 %v1859
  %v2004 = vunpack.c.h.b16 %v1859
  %v2005 = vunpack.c.l.b16 %v1873
  %v2006 = vunpack.c.h.b16 %v1873
  %v2007 = vunpack.c.l.b16 %v1883
  %v2008 = vunpack.c.h.b16 %v1883
  %v2009 = vunpack.c.l.b16 %v1897
  %v2010 = vunpack.c.h.b16 %v1897
  %v2011 = vunpack.c.l.b16 %v1907
  %v2012 = vunpack.c.h.b16 %v1907
  %v2013 = vunpack.c.l.b16 %v1921
  %v2014 = vunpack.c.h.b16 %v1921
  %v2015 = vunpack.c.l.b16 %v1931
  %v2016 = vunpack.c.h.b16 %v1931
  %v2017 = vunpack.c.l.b16 %v1945
  %v2018 = vunpack.c.h.b16 %v1945
  %v2019 = vunpack.c.l.b16 %v1955
  %v2020 = vunpack.c.h.b16 %v1955
  %v2021 = vpack.c.b16 %v1991, %v1989
  %v2022 = vpack.c.b16 %v1992, %v1990
  %v2023 = vpack.c.b16 %v1995, %v1993
  %v2024 = vpack.c.b16 %v1996, %v1994
  %v2025 = vpack.c.b16 %v1999, %v1997
  %v2026 = vpack.c.b16 %v2000, %v1998
  %v2027 = vpack.c.b16 %v2003, %v2001
  %v2028 = vpack.c.b16 %v2004, %v2002
  %v2029 = vpack.c.b16 %v2007, %v2005
  %v2030 = vpack.c.b16 %v2008, %v2006
  %v2031 = vpack.c.b16 %v2011, %v2009
  %v2032 = vpack.c.b16 %v2012, %v2010
  %v2033 = vpack.c.b16 %v2015, %v2013
  %v2034 = vpack.c.b16 %v2016, %v2014
  %v2035 = vpack.c.b16 %v2019, %v2017
  %v2036 = vpack.c.b16 %v2020, %v2018
  %v2085 = vunpack.c.l.b16 %v1957
  %v2086 = vunpack.c.h.b16 %v1957
  %v2087 = vunpack.c.l.b16 %v1958
  %v2088 = vunpack.c.h.b16 %v1958
  %v2089 = vunpack.c.l.b16 %v1959
  %v2090 = vunpack.c.h.b16 %v1959
  %v2091 = vunpack.c.l.b16 %v1960
  %v2092 = vunpack.c.h.b16 %v1960
  %v2093 = vunpack.c.l.b16 %v1961
  %v2094 = vunpack.c.h.b16 %v1961
  %v2095 = vunpack.c.l.b16 %v1962
  %v2096 = vunpack.c.h.b16 %v1962
  %v2097 = vunpack.c.l.b16 %v1963
  %v2098 = vunpack.c.h.b16 %v1963
  %v2099 = vunpack.c.l.b16 %v1964
  %v2100 = vunpack.c.h.b16 %v1964
  %v2101 = vunpack.c.l.b16 %v1965
  %v2102 = vunpack.c.h.b16 %v1965
  %v2103 = vunpack.c.l.b16 %v1966
  %v2104 = vunpack.c.h.b16 %v1966
  %v2105 = vunpack.c.l.b16 %v1967
  %v2106 = vunpack.c.h.b16 %v1967
  %v2107 = vunpack.c.l.b16 %v1968
  %v2108 = vunpack.c.h.b16 %v1968
  %v2109 = vunpack.c.l.b16 %v1969
  %v2110 = vunpack.c.h.b16 %v1969
  %v2111 = vunpack.c.l.b16 %v1970
  %v2112 = vunpack.c.h.b16 %v1970
  %v2113 = vunpack.c.l.b16 %v1971
  %v2114 = vunpack.c.h.b16 %v1971
  %v2115 = vunpack.c.l.b16 %v1972
  %v2116 = vunpack.c.h.b16 %v1972
  %v2117 = vunpack.c.l.b16 %v1973
  %v2118 = vunpack.c.h.b16 %v1973
  %v2119 = vunpack.c.l.b16 %v1974
  %v2120 = vunpack.c.h.b16 %v1974
  %v2121 = vunpack.c.l.b16 %v1975
  %v2122 = vunpack.c.h.b16 %v1975
  %v2123 = vunpack.c.l.b16 %v1976
  %v2124 = vunpack.c.h.b16 %v1976
  %v2125 = vunpack.c.l.b16 %v1977
  %v2126 = vunpack.c.h.b16 %v1977
  %v2127 = vunpack.c.l.b16 %v1978
  %v2128 = vunpack.c.h.b16 %v1978
  %v2129 = vunpack.c.l.b16 %v1979
  %v2130 = vunpack.c.h.b16 %v1979
  %v2131 = vunpack.c.l.b16 %v1980
  %v2132 = vunpack.c.h.b16 %v1980
  %v2133 = vunpack.c.l.b16 %v1981
  %v2134 = vunpack.c.h.b16 %v1981
  %v2135 = vunpack.c.l.b16 %v1982
  %v2136 = vunpack.c.h.b16 %v1982
  %v2137 = vunpack.c.l.b16 %v1983
  %v2138 = vunpack.c.h.b16 %v1983
  %v2139 = vunpack.c.l.b16 %v1984
  %v2140 = vunpack.c.h.b16 %v1984
  %v2141 = vunpack.c.l.b16 %v1985
  %v2142 = vunpack.c.h.b16 %v1985
  %v2143 = vunpack.c.l.b16 %v1986
  %v2144 = vunpack.c.h.b16 %v1986
  %v2145 = vunpack.c.l.b16 %v1987
  %v2146 = vunpack.c.h.b16 %v1987
  %v2147 = vunpack.c.l.b16 %v1988
  %v2148 = vunpack.c.h.b16 %v1988
  %v2149 = vpack.c.b16 %v2087, %v2085
  %v2150 = vpack.c.b16 %v2088, %v2086
  %v2151 = vpack.c.b16 %v2091, %v2089
  %v2152 = vpack.c.b16 %v2092, %v2090
  %v2153 = vpack.c.b16 %v2095, %v2093
  %v2154 = vpack.c.b16 %v2096, %v2094
  %v2155 = vpack.c.b16 %v2099, %v2097
  %v2156 = vpack.c.b16 %v2100, %v2098
  %v2157 = vpack.c.b16 %v2103, %v2101
  %v2158 = vpack.c.b16 %v2104, %v2102
  %v2159 = vpack.c.b16 %v2107, %v2105
  %v2160 = vpack.c.b16 %v2108, %v2106
  %v2161 = vpack.c.b16 %v2111, %v2109
  %v2162 = vpack.c.b16 %v2112, %v2110
  %v2163 = vpack.c.b16 %v2115, %v2113
  %v2164 = vpack.c.b16 %v2116, %v2114
  %v2165 = vpack.c.b16 %v2119, %v2117
  %v2166 = vpack.c.b16 %v2120, %v2118
  %v2167 = vpack.c.b16 %v2123, %v2121
  %v2168 = vpack.c.b16 %v2124, %v2122
  %v2169 = vpack.c.b16 %v2127, %v2125
  %v2170 = vpack.c.b16 %v2128, %v2126
  %v2171 = vpack.c.b16 %v2131, %v2129
  %v2172 = vpack.c.b16 %v2132, %v2130
  %v2173 = vpack.c.b16 %v2135, %v2133
  %v2174 = vpack.c.b16 %v2136, %v2134
  %v2175 = vpack.c.b16 %v2139, %v2137
  %v2176 = vpack.c.b16 %v2140, %v2138
  %v2177 = vpack.c.b16 %v2143, %v2141
  %v2178 = vpack.c.b16 %v2144, %v2142
  %v2179 = vpack.c.b16 %v2147, %v2145
  %v2180 = vpack.c.b16 %v2148, %v2146
  %2213 = vmatpush.bf16.msra.mxu0 %v2163
  %2214 = vmatpush.bf16.msra.mxu0 %v2161
  %2215 = vmatpush.bf16.msra.mxu0 %v2159
  %2216 = vmatpush.bf16.msra.mxu0 %v2157
  %2217 = vmatpush.bf16.msra.mxu0 %v2155
  %2218 = vmatpush.bf16.msra.mxu0 %v2153
  %2219 = vmatpush.bf16.msra.mxu0 %v2151
  %2220 = vmatpush.bf16.msra.mxu0 %v2149
  %2221 = vmatmul.bf16.gmra.mxu0 %v2021
  %v2222 = vpop.f32.mrf.mxu0
  %v2223 = vadd.f32 0.0, %v2222
  %v2224 = vpop.f32.mrf.mxu0
  %v2225 = vadd.f32 0.0, %v2224
  %2226 = vmatmul.bf16.gmra.mxu0 %v2023
  %v2227 = vpop.f32.mrf.mxu0
  %v2228 = vadd.f32 0.0, %v2227
  %v2229 = vpop.f32.mrf.mxu0
  %v2230 = vadd.f32 0.0, %v2229
  %2231 = vmatmul.bf16.gmra.mxu0 %v2025
  %v2232 = vpop.f32.mrf.mxu0
  %v2233 = vadd.f32 0.0, %v2232
  %v2234 = vpop.f32.mrf.mxu0
  %v2235 = vadd.f32 0.0, %v2234
  %2236 = vmatmul.bf16.gmra.mxu0 %v2027
  %v2237 = vpop.f32.mrf.mxu0
  %v2238 = vadd.f32 0.0, %v2237
  %v2239 = vpop.f32.mrf.mxu0
  %v2240 = vadd.f32 0.0, %v2239
  %2241 = vmatmul.bf16.gmra.mxu0 %v2029
  %v2242 = vpop.f32.mrf.mxu0
  %v2243 = vadd.f32 0.0, %v2242
  %v2244 = vpop.f32.mrf.mxu0
  %v2245 = vadd.f32 0.0, %v2244
  %2246 = vmatmul.bf16.gmra.mxu0 %v2031
  %v2247 = vpop.f32.mrf.mxu0
  %v2248 = vadd.f32 0.0, %v2247
  %v2249 = vpop.f32.mrf.mxu0
  %v2250 = vadd.f32 0.0, %v2249
  %2251 = vmatmul.bf16.gmra.mxu0 %v2033
  %v2252 = vpop.f32.mrf.mxu0
  %v2253 = vadd.f32 0.0, %v2252
  %v2254 = vpop.f32.mrf.mxu0
  %v2255 = vadd.f32 0.0, %v2254
  %2256 = vmatmul.bf16.gmra.mxu0 %v2035
  %v2257 = vpop.f32.mrf.mxu0
  %v2258 = vadd.f32 0.0, %v2257
  %v2259 = vpop.f32.mrf.mxu0
  %v2260 = vadd.f32 0.0, %v2259
  %2261 = vdwg.mxu0
  %2262 = vmatpush.bf16.msra.mxu0 %v2179
  %2263 = vmatpush.bf16.msra.mxu0 %v2177
  %2264 = vmatpush.bf16.msra.mxu0 %v2175
  %2265 = vmatpush.bf16.msra.mxu0 %v2173
  %2266 = vmatpush.bf16.msra.mxu0 %v2171
  %2267 = vmatpush.bf16.msra.mxu0 %v2169
  %2268 = vmatpush.bf16.msra.mxu0 %v2167
  %2269 = vmatpush.bf16.msra.mxu0 %v2165
  %2270 = vmatmul.bf16.gmra.mxu0 %v2022
  %v2271 = vpop.f32.mrf.mxu0
  %v2272 = vadd.f32 %v2223, %v2271
  %v2273 = vpop.f32.mrf.mxu0
  %v2274 = vadd.f32 %v2225, %v2273
  %2275 = vmatmul.bf16.gmra.mxu0 %v2024
  %v2276 = vpop.f32.mrf.mxu0
  %v2277 = vadd.f32 %v2228, %v2276
  %v2278 = vpop.f32.mrf.mxu0
  %v2279 = vadd.f32 %v2230, %v2278
  %2280 = vmatmul.bf16.gmra.mxu0 %v2026
  %v2281 = vpop.f32.mrf.mxu0
  %v2282 = vadd.f32 %v2233, %v2281
  %v2283 = vpop.f32.mrf.mxu0
  %v2284 = vadd.f32 %v2235, %v2283
  %2285 = vmatmul.bf16.gmra.mxu0 %v2028
  %v2286 = vpop.f32.mrf.mxu0
  %v2287 = vadd.f32 %v2238, %v2286
  %v2288 = vpop.f32.mrf.mxu0
  %v2289 = vadd.f32 %v2240, %v2288
  %2290 = vmatmul.bf16.gmra.mxu0 %v2030
  %v2291 = vpop.f32.mrf.mxu0
  %v2292 = vadd.f32 %v2243, %v2291
  %v2293 = vpop.f32.mrf.mxu0
  %v2294 = vadd.f32 %v2245, %v2293
  %2295 = vmatmul.bf16.gmra.mxu0 %v2032
  %v2296 = vpop.f32.mrf.mxu0
  %v2297 = vadd.f32 %v2248, %v2296
  %v2298 = vpop.f32.mrf.mxu0
  %v2299 = vadd.f32 %v2250, %v2298
  %2300 = vmatmul.bf16.gmra.mxu0 %v2034
  %v2301 = vpop.f32.mrf.mxu0
  %v2302 = vadd.f32 %v2253, %v2301
  %v2303 = vpop.f32.mrf.mxu0
  %v2304 = vadd.f32 %v2255, %v2303
  %2305 = vmatmul.bf16.gmra.mxu0 %v2036
  %v2306 = vpop.f32.mrf.mxu0
  %v2307 = vadd.f32 %v2258, %v2306
  %v2308 = vpop.f32.mrf.mxu0
  %v2309 = vadd.f32 %v2260, %v2308
  %2310 = vdwg.mxu0
  %2311 = vmatpush.bf16.msra.mxu0 %v2164
  %2312 = vmatpush.bf16.msra.mxu0 %v2162
  %2313 = vmatpush.bf16.msra.mxu0 %v2160
  %2314 = vmatpush.bf16.msra.mxu0 %v2158
  %2315 = vmatpush.bf16.msra.mxu0 %v2156
  %2316 = vmatpush.bf16.msra.mxu0 %v2154
  %2317 = vmatpush.bf16.msra.mxu0 %v2152
  %2318 = vmatpush.bf16.msra.mxu0 %v2150
  %2319 = vmatmul.bf16.gmra.mxu0 %v2021
  %v2320 = vpop.f32.mrf.mxu0
  %v2321 = vadd.f32 0.0, %v2320
  %v2322 = vpop.f32.mrf.mxu0
  %v2323 = vadd.f32 0.0, %v2322
  %2324 = vmatmul.bf16.gmra.mxu0 %v2023
  %v2325 = vpop.f32.mrf.mxu0
  %v2326 = vadd.f32 0.0, %v2325
  %v2327 = vpop.f32.mrf.mxu0
  %v2328 = vadd.f32 0.0, %v2327
  %2329 = vmatmul.bf16.gmra.mxu0 %v2025
  %v2330 = vpop.f32.mrf.mxu0
  %v2331 = vadd.f32 0.0, %v2330
  %v2332 = vpop.f32.mrf.mxu0
  %v2333 = vadd.f32 0.0, %v2332
  %2334 = vmatmul.bf16.gmra.mxu0 %v2027
  %v2335 = vpop.f32.mrf.mxu0
  %v2336 = vadd.f32 0.0, %v2335
  %v2337 = vpop.f32.mrf.mxu0
  %v2338 = vadd.f32 0.0, %v2337
  %2339 = vmatmul.bf16.gmra.mxu0 %v2029
  %v2340 = vpop.f32.mrf.mxu0
  %v2341 = vadd.f32 0.0, %v2340
  %v2342 = vpop.f32.mrf.mxu0
  %v2343 = vadd.f32 0.0, %v2342
  %2344 = vmatmul.bf16.gmra.mxu0 %v2031
  %v2345 = vpop.f32.mrf.mxu0
  %v2346 = vadd.f32 0.0, %v2345
  %v2347 = vpop.f32.mrf.mxu0
  %v2348 = vadd.f32 0.0, %v2347
  %2349 = vmatmul.bf16.gmra.mxu0 %v2033
  %v2350 = vpop.f32.mrf.mxu0
  %v2351 = vadd.f32 0.0, %v2350
  %v2352 = vpop.f32.mrf.mxu0
  %v2353 = vadd.f32 0.0, %v2352
  %2354 = vmatmul.bf16.gmra.mxu0 %v2035
  %v2355 = vpop.f32.mrf.mxu0
  %v2356 = vadd.f32 0.0, %v2355
  %v2357 = vpop.f32.mrf.mxu0
  %v2358 = vadd.f32 0.0, %v2357
  %2359 = vdwg.mxu0
  %2360 = vmatpush.bf16.msra.mxu0 %v2180
  %2361 = vmatpush.bf16.msra.mxu0 %v2178
  %2362 = vmatpush.bf16.msra.mxu0 %v2176
  %2363 = vmatpush.bf16.msra.mxu0 %v2174
  %2364 = vmatpush.bf16.msra.mxu0 %v2172
  %2365 = vmatpush.bf16.msra.mxu0 %v2170
  %2366 = vmatpush.bf16.msra.mxu0 %v2168
  %2367 = vmatpush.bf16.msra.mxu0 %v2166
  %2368 = vmatmul.bf16.gmra.mxu0 %v2022
  %v2369 = vpop.f32.mrf.mxu0
  %v2370 = vadd.f32 %v2321, %v2369
  %v2371 = vpop.f32.mrf.mxu0
  %v2372 = vadd.f32 %v2323, %v2371
  %2373 = vmatmul.bf16.gmra.mxu0 %v2024
  %v2374 = vpop.f32.mrf.mxu0
  %v2375 = vadd.f32 %v2326, %v2374
  %v2376 = vpop.f32.mrf.mxu0
  %v2377 = vadd.f32 %v2328, %v2376
  %2378 = vmatmul.bf16.gmra.mxu0 %v2026
  %v2379 = vpop.f32.mrf.mxu0
  %v2380 = vadd.f32 %v2331, %v2379
  %v2381 = vpop.f32.mrf.mxu0
  %v2382 = vadd.f32 %v2333, %v2381
  %2383 = vmatmul.bf16.gmra.mxu0 %v2028
  %v2384 = vpop.f32.mrf.mxu0
  %v2385 = vadd.f32 %v2336, %v2384
  %v2386 = vpop.f32.mrf.mxu0
  %v2387 = vadd.f32 %v2338, %v2386
  %2388 = vmatmul.bf16.gmra.mxu0 %v2030
  %v2389 = vpop.f32.mrf.mxu0
  %v2390 = vadd.f32 %v2341, %v2389
  %v2391 = vpop.f32.mrf.mxu0
  %v2392 = vadd.f32 %v2343, %v2391
  %2393 = vmatmul.bf16.gmra.mxu0 %v2032
  %v2394 = vpop.f32.mrf.mxu0
  %v2395 = vadd.f32 %v2346, %v2394
  %v2396 = vpop.f32.mrf.mxu0
  %v2397 = vadd.f32 %v2348, %v2396
  %2398 = vmatmul.bf16.gmra.mxu0 %v2034
  %v2399 = vpop.f32.mrf.mxu0
  %v2400 = vadd.f32 %v2351, %v2399
  %v2401 = vpop.f32.mrf.mxu0
  %v2402 = vadd.f32 %v2353, %v2401
  %2403 = vmatmul.bf16.gmra.mxu0 %v2036
  %v2404 = vpop.f32.mrf.mxu0
  %v2405 = vadd.f32 %v2356, %v2404
  %v2406 = vpop.f32.mrf.mxu0
  %v2407 = vadd.f32 %v2358, %v2406
  %2408 = vdwg.mxu0
  %v2409 = vadd.f32 %v1705, %v2272
  %v2410 = vadd.f32 %v1706, %v2370
  %v2411 = vadd.f32 %v1707, %v2274
  %v2412 = vadd.f32 %v1708, %v2372
  %v2413 = vadd.f32 %v1709, %v2277
  %v2414 = vadd.f32 %v1710, %v2375
  %v2415 = vadd.f32 %v1711, %v2279
  %v2416 = vadd.f32 %v1712, %v2377
  %v2417 = vadd.f32 %v1713, %v2282
  %v2418 = vadd.f32 %v1714, %v2380
  %v2419 = vadd.f32 %v1715, %v2284
  %v2420 = vadd.f32 %v1716, %v2382
  %v2421 = vadd.f32 %v1717, %v2287
  %v2422 = vadd.f32 %v1718, %v2385
  %v2423 = vadd.f32 %v1719, %v2289
  %v2424 = vadd.f32 %v1720, %v2387
  %v2425 = vadd.f32 %v1721, %v2292
  %v2426 = vadd.f32 %v1722, %v2390
  %v2427 = vadd.f32 %v1723, %v2294
  %v2428 = vadd.f32 %v1724, %v2392
  %v2429 = vadd.f32 %v1725, %v2297
  %v2430 = vadd.f32 %v1726, %v2395
  %v2431 = vadd.f32 %v1727, %v2299
  %v2432 = vadd.f32 %v1728, %v2397
  %v2433 = vadd.f32 %v1729, %v2302
  %v2434 = vadd.f32 %v1730, %v2400
  %v2435 = vadd.f32 %v1731, %v2304
  %v2436 = vadd.f32 %v1732, %v2402
  %v2437 = vadd.f32 %v1733, %v2307
  %v2438 = vadd.f32 %v1734, %v2405
  %v2439 = vadd.f32 %v1735, %v2309
  %v2440 = vadd.f32 %v1736, %v2407
  %v2441 = vld [vmem:[#allocation2] sm:$0xee]
  %v2442 = vld [vmem:[#allocation2 + $0x18] sm:$0xee]
  %v2443 = vld [vmem:[#allocation2 + $0x30] sm:$0xee]
  %v2444 = vld [vmem:[#allocation2 + $0x48] sm:$0xee]
  %v2445 = vld [vmem:[#allocation2 + $0x60] sm:$0xee]
  %v2446 = vld [vmem:[#allocation2 + $0x78] sm:$0xee]
  %v2447 = vld [vmem:[#allocation2 + $0x90] sm:$0xee]
  %v2448 = vld [vmem:[#allocation2 + $0xa8] sm:$0xee]
  %vm2473 = vcmask 1042432
  %vm2474 = vcmask 1046532
  %vm2475 = vmor %vm2473, %vm2474
  %v2476 = vrot.slane %v2441, 5
  %v2477 = vrot.slane %v2476, 4
  %v2478 = vrot.slane %v1738, 5
  %v2479 = vsel %vm2475, %v2477, %v2478
  %v2480 = vrot.slane %v2478, 4
  %v2481 = vrot.slane %v1739, 5
  %v2482 = vsel %vm2475, %v2480, %v2481
  %v2483 = vrot.slane %v2442, 5
  %v2484 = vrot.slane %v2483, 4
  %v2485 = vrot.slane %v1741, 5
  %v2486 = vsel %vm2475, %v2484, %v2485
  %v2487 = vrot.slane %v2485, 4
  %v2488 = vrot.slane %v1742, 5
  %v2489 = vsel %vm2475, %v2487, %v2488
  %v2490 = vrot.slane %v2443, 5
  %v2491 = vrot.slane %v2490, 4
  %v2492 = vrot.slane %v1744, 5
  %v2493 = vsel %vm2475, %v2491, %v2492
  %v2494 = vrot.slane %v2492, 4
  %v2495 = vrot.slane %v1745, 5
  %v2496 = vsel %vm2475, %v2494, %v2495
  %v2497 = vrot.slane %v2444, 5
  %v2498 = vrot.slane %v2497, 4
  %v2499 = vrot.slane %v1747, 5
  %v2500 = vsel %vm2475, %v2498, %v2499
  %v2501 = vrot.slane %v2499, 4
  %v2502 = vrot.slane %v1748, 5
  %v2503 = vsel %vm2475, %v2501, %v2502
  %v2504 = vrot.slane %v2445, 5
  %v2505 = vrot.slane %v2504, 4
  %v2506 = vrot.slane %v1750, 5
  %v2507 = vsel %vm2475, %v2505, %v2506
  %v2508 = vrot.slane %v2506, 4
  %v2509 = vrot.slane %v1751, 5
  %v2510 = vsel %vm2475, %v2508, %v2509
  %v2511 = vrot.slane %v2446, 5
  %v2512 = vrot.slane %v2511, 4
  %v2513 = vrot.slane %v1753, 5
  %v2514 = vsel %vm2475, %v2512, %v2513
  %v2515 = vrot.slane %v2513, 4
  %v2516 = vrot.slane %v1754, 5
  %v2517 = vsel %vm2475, %v2515, %v2516
  %v2518 = vrot.slane %v2447, 5
  %v2519 = vrot.slane %v2518, 4
  %v2520 = vrot.slane %v1756, 5
  %v2521 = vsel %vm2475, %v2519, %v2520
  %v2522 = vrot.slane %v2520, 4
  %v2523 = vrot.slane %v1757, 5
  %v2524 = vsel %vm2475, %v2522, %v2523
  %v2525 = vrot.slane %v2448, 5
  %v2526 = vrot.slane %v2525, 4
  %v2527 = vrot.slane %v1759, 5
  %v2528 = vsel %vm2475, %v2526, %v2527
  %v2529 = vrot.slane %v2527, 4
  %v2530 = vrot.slane %v1760, 5
  %v2531 = vsel %vm2475, %v2529, %v2530
  %s2532 = scalar_lea.vmem %s3, 512
  %v2533 = vld [vmem:[%s2532] sm:$0xff]
  %v2534 = vld [vmem:[%s2532 + $0x8] sm:$0xff]
  %v2535 = vld [vmem:[%s2532 + $0x10] sm:$0xff]
  %v2536 = vld [vmem:[%s2532 + $0x18] sm:$0xff]
  %v2537 = vld [vmem:[%s2532 + $0x20] sm:$0xff]
  %v2538 = vld [vmem:[%s2532 + $0x28] sm:$0xff]
  %v2539 = vld [vmem:[%s2532 + $0x30] sm:$0xff]
  %v2540 = vld [vmem:[%s2532 + $0x38] sm:$0xff]
  %v2541 = vld [vmem:[%s2532 + $0x40] sm:$0xff]
  %v2542 = vld [vmem:[%s2532 + $0x48] sm:$0xff]
  %v2543 = vld [vmem:[%s2532 + $0x50] sm:$0xff]
  %v2544 = vld [vmem:[%s2532 + $0x58] sm:$0xff]
  %v2545 = vld [vmem:[%s2532 + $0x60] sm:$0xff]
  %v2546 = vld [vmem:[%s2532 + $0x68] sm:$0xff]
  %v2547 = vld [vmem:[%s2532 + $0x70] sm:$0xff]
  %v2548 = vld [vmem:[%s2532 + $0x78] sm:$0xff]
  %v2549 = vld [vmem:[%s2532 + $0x80] sm:$0xff]
  %v2550 = vld [vmem:[%s2532 + $0x88] sm:$0xff]
  %v2551 = vld [vmem:[%s2532 + $0x90] sm:$0xff]
  %v2552 = vld [vmem:[%s2532 + $0x98] sm:$0xff]
  %v2553 = vld [vmem:[%s2532 + $0xa0] sm:$0xff]
  %v2554 = vld [vmem:[%s2532 + $0xa8] sm:$0xff]
  %v2555 = vld [vmem:[%s2532 + $0xb0] sm:$0xff]
  %v2556 = vld [vmem:[%s2532 + $0xb8] sm:$0xff]
  %v2557 = vld [vmem:[%s2532 + $0xc0] sm:$0xff]
  %v2558 = vld [vmem:[%s2532 + $0xc8] sm:$0xff]
  %v2559 = vld [vmem:[%s2532 + $0xd0] sm:$0xff]
  %v2560 = vld [vmem:[%s2532 + $0xd8] sm:$0xff]
  %v2561 = vld [vmem:[%s2532 + $0xe0] sm:$0xff]
  %v2562 = vld [vmem:[%s2532 + $0xe8] sm:$0xff]
  %v2563 = vld [vmem:[%s2532 + $0xf0] sm:$0xff]
  %v2564 = vld [vmem:[%s2532 + $0xf8] sm:$0xff]
  %v2565 = vunpack.c.l.b16 %v2479
  %v2566 = vunpack.c.h.b16 %v2479
  %v2567 = vunpack.c.l.b16 %v2482
  %v2568 = vunpack.c.h.b16 %v2482
  %v2569 = vunpack.c.l.b16 %v2486
  %v2570 = vunpack.c.h.b16 %v2486
  %v2571 = vunpack.c.l.b16 %v2489
  %v2572 = vunpack.c.h.b16 %v2489
  %v2573 = vunpack.c.l.b16 %v2493
  %v2574 = vunpack.c.h.b16 %v2493
  %v2575 = vunpack.c.l.b16 %v2496
  %v2576 = vunpack.c.h.b16 %v2496
  %v2577 = vunpack.c.l.b16 %v2500
  %v2578 = vunpack.c.h.b16 %v2500
  %v2579 = vunpack.c.l.b16 %v2503
  %v2580 = vunpack.c.h.b16 %v2503
  %v2581 = vunpack.c.l.b16 %v2507
  %v2582 = vunpack.c.h.b16 %v2507
  %v2583 = vunpack.c.l.b16 %v2510
  %v2584 = vunpack.c.h.b16 %v2510
  %v2585 = vunpack.c.l.b16 %v2514
  %v2586 = vunpack.c.h.b16 %v2514
  %v2587 = vunpack.c.l.b16 %v2517
  %v2588 = vunpack.c.h.b16 %v2517
  %v2589 = vunpack.c.l.b16 %v2521
  %v2590 = vunpack.c.h.b16 %v2521
  %v2591 = vunpack.c.l.b16 %v2524
  %v2592 = vunpack.c.h.b16 %v2524
  %v2593 = vunpack.c.l.b16 %v2528
  %v2594 = vunpack.c.h.b16 %v2528
  %v2595 = vunpack.c.l.b16 %v2531
  %v2596 = vunpack.c.h.b16 %v2531
  %v2597 = vpack.c.b16 %v2567, %v2565
  %v2598 = vpack.c.b16 %v2568, %v2566
  %v2599 = vpack.c.b16 %v2571, %v2569
  %v2600 = vpack.c.b16 %v2572, %v2570
  %v2601 = vpack.c.b16 %v2575, %v2573
  %v2602 = vpack.c.b16 %v2576, %v2574
  %v2603 = vpack.c.b16 %v2579, %v2577
  %v2604 = vpack.c.b16 %v2580, %v2578
  %v2605 = vpack.c.b16 %v2583, %v2581
  %v2606 = vpack.c.b16 %v2584, %v2582
  %v2607 = vpack.c.b16 %v2587, %v2585
  %v2608 = vpack.c.b16 %v2588, %v2586
  %v2609 = vpack.c.b16 %v2591, %v2589
  %v2610 = vpack.c.b16 %v2592, %v2590
  %v2611 = vpack.c.b16 %v2595, %v2593
  %v2612 = vpack.c.b16 %v2596, %v2594
  %v2661 = vunpack.c.l.b16 %v2533
  %v2662 = vunpack.c.h.b16 %v2533
  %v2663 = vunpack.c.l.b16 %v2534
  %v2664 = vunpack.c.h.b16 %v2534
  %v2665 = vunpack.c.l.b16 %v2535
  %v2666 = vunpack.c.h.b16 %v2535
  %v2667 = vunpack.c.l.b16 %v2536
  %v2668 = vunpack.c.h.b16 %v2536
  %v2669 = vunpack.c.l.b16 %v2537
  %v2670 = vunpack.c.h.b16 %v2537
  %v2671 = vunpack.c.l.b16 %v2538
  %v2672 = vunpack.c.h.b16 %v2538
  %v2673 = vunpack.c.l.b16 %v2539
  %v2674 = vunpack.c.h.b16 %v2539
  %v2675 = vunpack.c.l.b16 %v2540
  %v2676 = vunpack.c.h.b16 %v2540
  %v2677 = vunpack.c.l.b16 %v2541
  %v2678 = vunpack.c.h.b16 %v2541
  %v2679 = vunpack.c.l.b16 %v2542
  %v2680 = vunpack.c.h.b16 %v2542
  %v2681 = vunpack.c.l.b16 %v2543
  %v2682 = vunpack.c.h.b16 %v2543
  %v2683 = vunpack.c.l.b16 %v2544
  %v2684 = vunpack.c.h.b16 %v2544
  %v2685 = vunpack.c.l.b16 %v2545
  %v2686 = vunpack.c.h.b16 %v2545
  %v2687 = vunpack.c.l.b16 %v2546
  %v2688 = vunpack.c.h.b16 %v2546
  %v2689 = vunpack.c.l.b16 %v2547
  %v2690 = vunpack.c.h.b16 %v2547
  %v2691 = vunpack.c.l.b16 %v2548
  %v2692 = vunpack.c.h.b16 %v2548
  %v2693 = vunpack.c.l.b16 %v2549
  %v2694 = vunpack.c.h.b16 %v2549
  %v2695 = vunpack.c.l.b16 %v2550
  %v2696 = vunpack.c.h.b16 %v2550
  %v2697 = vunpack.c.l.b16 %v2551
  %v2698 = vunpack.c.h.b16 %v2551
  %v2699 = vunpack.c.l.b16 %v2552
  %v2700 = vunpack.c.h.b16 %v2552
  %v2701 = vunpack.c.l.b16 %v2553
  %v2702 = vunpack.c.h.b16 %v2553
  %v2703 = vunpack.c.l.b16 %v2554
  %v2704 = vunpack.c.h.b16 %v2554
  %v2705 = vunpack.c.l.b16 %v2555
  %v2706 = vunpack.c.h.b16 %v2555
  %v2707 = vunpack.c.l.b16 %v2556
  %v2708 = vunpack.c.h.b16 %v2556
  %v2709 = vunpack.c.l.b16 %v2557
  %v2710 = vunpack.c.h.b16 %v2557
  %v2711 = vunpack.c.l.b16 %v2558
  %v2712 = vunpack.c.h.b16 %v2558
  %v2713 = vunpack.c.l.b16 %v2559
  %v2714 = vunpack.c.h.b16 %v2559
  %v2715 = vunpack.c.l.b16 %v2560
  %v2716 = vunpack.c.h.b16 %v2560
  %v2717 = vunpack.c.l.b16 %v2561
  %v2718 = vunpack.c.h.b16 %v2561
  %v2719 = vunpack.c.l.b16 %v2562
  %v2720 = vunpack.c.h.b16 %v2562
  %v2721 = vunpack.c.l.b16 %v2563
  %v2722 = vunpack.c.h.b16 %v2563
  %v2723 = vunpack.c.l.b16 %v2564
  %v2724 = vunpack.c.h.b16 %v2564
  %v2725 = vpack.c.b16 %v2663, %v2661
  %v2726 = vpack.c.b16 %v2664, %v2662
  %v2727 = vpack.c.b16 %v2667, %v2665
  %v2728 = vpack.c.b16 %v2668, %v2666
  %v2729 = vpack.c.b16 %v2671, %v2669
  %v2730 = vpack.c.b16 %v2672, %v2670
  %v2731 = vpack.c.b16 %v2675, %v2673
  %v2732 = vpack.c.b16 %v2676, %v2674
  %v2733 = vpack.c.b16 %v2679, %v2677
  %v2734 = vpack.c.b16 %v2680, %v2678
  %v2735 = vpack.c.b16 %v2683, %v2681
  %v2736 = vpack.c.b16 %v2684, %v2682
  %v2737 = vpack.c.b16 %v2687, %v2685
  %v2738 = vpack.c.b16 %v2688, %v2686
  %v2739 = vpack.c.b16 %v2691, %v2689
  %v2740 = vpack.c.b16 %v2692, %v2690
  %v2741 = vpack.c.b16 %v2695, %v2693
  %v2742 = vpack.c.b16 %v2696, %v2694
  %v2743 = vpack.c.b16 %v2699, %v2697
  %v2744 = vpack.c.b16 %v2700, %v2698
  %v2745 = vpack.c.b16 %v2703, %v2701
  %v2746 = vpack.c.b16 %v2704, %v2702
  %v2747 = vpack.c.b16 %v2707, %v2705
  %v2748 = vpack.c.b16 %v2708, %v2706
  %v2749 = vpack.c.b16 %v2711, %v2709
  %v2750 = vpack.c.b16 %v2712, %v2710
  %v2751 = vpack.c.b16 %v2715, %v2713
  %v2752 = vpack.c.b16 %v2716, %v2714
  %v2753 = vpack.c.b16 %v2719, %v2717
  %v2754 = vpack.c.b16 %v2720, %v2718
  %v2755 = vpack.c.b16 %v2723, %v2721
  %v2756 = vpack.c.b16 %v2724, %v2722
  %2789 = vmatpush.bf16.msra.mxu0 %v2739
  %2790 = vmatpush.bf16.msra.mxu0 %v2737
  %2791 = vmatpush.bf16.msra.mxu0 %v2735
  %2792 = vmatpush.bf16.msra.mxu0 %v2733
  %2793 = vmatpush.bf16.msra.mxu0 %v2731
  %2794 = vmatpush.bf16.msra.mxu0 %v2729
  %2795 = vmatpush.bf16.msra.mxu0 %v2727
  %2796 = vmatpush.bf16.msra.mxu0 %v2725
  %2797 = vmatmul.bf16.gmra.mxu0 %v2597
  %v2798 = vpop.f32.mrf.mxu0
  %v2799 = vadd.f32 0.0, %v2798
  %v2800 = vpop.f32.mrf.mxu0
  %v2801 = vadd.f32 0.0, %v2800
  %2802 = vmatmul.bf16.gmra.mxu0 %v2599
  %v2803 = vpop.f32.mrf.mxu0
  %v2804 = vadd.f32 0.0, %v2803
  %v2805 = vpop.f32.mrf.mxu0
  %v2806 = vadd.f32 0.0, %v2805
  %2807 = vmatmul.bf16.gmra.mxu0 %v2601
  %v2808 = vpop.f32.mrf.mxu0
  %v2809 = vadd.f32 0.0, %v2808
  %v2810 = vpop.f32.mrf.mxu0
  %v2811 = vadd.f32 0.0, %v2810
  %2812 = vmatmul.bf16.gmra.mxu0 %v2603
  %v2813 = vpop.f32.mrf.mxu0
  %v2814 = vadd.f32 0.0, %v2813
  %v2815 = vpop.f32.mrf.mxu0
  %v2816 = vadd.f32 0.0, %v2815
  %2817 = vmatmul.bf16.gmra.mxu0 %v2605
  %v2818 = vpop.f32.mrf.mxu0
  %v2819 = vadd.f32 0.0, %v2818
  %v2820 = vpop.f32.mrf.mxu0
  %v2821 = vadd.f32 0.0, %v2820
  %2822 = vmatmul.bf16.gmra.mxu0 %v2607
  %v2823 = vpop.f32.mrf.mxu0
  %v2824 = vadd.f32 0.0, %v2823
  %v2825 = vpop.f32.mrf.mxu0
  %v2826 = vadd.f32 0.0, %v2825
  %2827 = vmatmul.bf16.gmra.mxu0 %v2609
  %v2828 = vpop.f32.mrf.mxu0
  %v2829 = vadd.f32 0.0, %v2828
  %v2830 = vpop.f32.mrf.mxu0
  %v2831 = vadd.f32 0.0, %v2830
  %2832 = vmatmul.bf16.gmra.mxu0 %v2611
  %v2833 = vpop.f32.mrf.mxu0
  %v2834 = vadd.f32 0.0, %v2833
  %v2835 = vpop.f32.mrf.mxu0
  %v2836 = vadd.f32 0.0, %v2835
  %2837 = vdwg.mxu0
  %2838 = vmatpush.bf16.msra.mxu0 %v2755
  %2839 = vmatpush.bf16.msra.mxu0 %v2753
  %2840 = vmatpush.bf16.msra.mxu0 %v2751
  %2841 = vmatpush.bf16.msra.mxu0 %v2749
  %2842 = vmatpush.bf16.msra.mxu0 %v2747
  %2843 = vmatpush.bf16.msra.mxu0 %v2745
  %2844 = vmatpush.bf16.msra.mxu0 %v2743
  %2845 = vmatpush.bf16.msra.mxu0 %v2741
  %2846 = vmatmul.bf16.gmra.mxu0 %v2598
  %v2847 = vpop.f32.mrf.mxu0
  %v2848 = vadd.f32 %v2799, %v2847
  %v2849 = vpop.f32.mrf.mxu0
  %v2850 = vadd.f32 %v2801, %v2849
  %2851 = vmatmul.bf16.gmra.mxu0 %v2600
  %v2852 = vpop.f32.mrf.mxu0
  %v2853 = vadd.f32 %v2804, %v2852
  %v2854 = vpop.f32.mrf.mxu0
  %v2855 = vadd.f32 %v2806, %v2854
  %2856 = vmatmul.bf16.gmra.mxu0 %v2602
  %v2857 = vpop.f32.mrf.mxu0
  %v2858 = vadd.f32 %v2809, %v2857
  %v2859 = vpop.f32.mrf.mxu0
  %v2860 = vadd.f32 %v2811, %v2859
  %2861 = vmatmul.bf16.gmra.mxu0 %v2604
  %v2862 = vpop.f32.mrf.mxu0
  %v2863 = vadd.f32 %v2814, %v2862
  %v2864 = vpop.f32.mrf.mxu0
  %v2865 = vadd.f32 %v2816, %v2864
  %2866 = vmatmul.bf16.gmra.mxu0 %v2606
  %v2867 = vpop.f32.mrf.mxu0
  %v2868 = vadd.f32 %v2819, %v2867
  %v2869 = vpop.f32.mrf.mxu0
  %v2870 = vadd.f32 %v2821, %v2869
  %2871 = vmatmul.bf16.gmra.mxu0 %v2608
  %v2872 = vpop.f32.mrf.mxu0
  %v2873 = vadd.f32 %v2824, %v2872
  %v2874 = vpop.f32.mrf.mxu0
  %v2875 = vadd.f32 %v2826, %v2874
  %2876 = vmatmul.bf16.gmra.mxu0 %v2610
  %v2877 = vpop.f32.mrf.mxu0
  %v2878 = vadd.f32 %v2829, %v2877
  %v2879 = vpop.f32.mrf.mxu0
  %v2880 = vadd.f32 %v2831, %v2879
  %2881 = vmatmul.bf16.gmra.mxu0 %v2612
  %v2882 = vpop.f32.mrf.mxu0
  %v2883 = vadd.f32 %v2834, %v2882
  %v2884 = vpop.f32.mrf.mxu0
  %v2885 = vadd.f32 %v2836, %v2884
  %2886 = vdwg.mxu0
  %2887 = vmatpush.bf16.msra.mxu0 %v2740
  %2888 = vmatpush.bf16.msra.mxu0 %v2738
  %2889 = vmatpush.bf16.msra.mxu0 %v2736
  %2890 = vmatpush.bf16.msra.mxu0 %v2734
  %2891 = vmatpush.bf16.msra.mxu0 %v2732
  %2892 = vmatpush.bf16.msra.mxu0 %v2730
  %2893 = vmatpush.bf16.msra.mxu0 %v2728
  %2894 = vmatpush.bf16.msra.mxu0 %v2726
  %2895 = vmatmul.bf16.gmra.mxu0 %v2597
  %v2896 = vpop.f32.mrf.mxu0
  %v2897 = vadd.f32 0.0, %v2896
  %v2898 = vpop.f32.mrf.mxu0
  %v2899 = vadd.f32 0.0, %v2898
  %2900 = vmatmul.bf16.gmra.mxu0 %v2599
  %v2901 = vpop.f32.mrf.mxu0
  %v2902 = vadd.f32 0.0, %v2901
  %v2903 = vpop.f32.mrf.mxu0
  %v2904 = vadd.f32 0.0, %v2903
  %2905 = vmatmul.bf16.gmra.mxu0 %v2601
  %v2906 = vpop.f32.mrf.mxu0
  %v2907 = vadd.f32 0.0, %v2906
  %v2908 = vpop.f32.mrf.mxu0
  %v2909 = vadd.f32 0.0, %v2908
  %2910 = vmatmul.bf16.gmra.mxu0 %v2603
  %v2911 = vpop.f32.mrf.mxu0
  %v2912 = vadd.f32 0.0, %v2911
  %v2913 = vpop.f32.mrf.mxu0
  %v2914 = vadd.f32 0.0, %v2913
  %2915 = vmatmul.bf16.gmra.mxu0 %v2605
  %v2916 = vpop.f32.mrf.mxu0
  %v2917 = vadd.f32 0.0, %v2916
  %v2918 = vpop.f32.mrf.mxu0
  %v2919 = vadd.f32 0.0, %v2918
  %2920 = vmatmul.bf16.gmra.mxu0 %v2607
  %v2921 = vpop.f32.mrf.mxu0
  %v2922 = vadd.f32 0.0, %v2921
  %v2923 = vpop.f32.mrf.mxu0
  %v2924 = vadd.f32 0.0, %v2923
  %2925 = vmatmul.bf16.gmra.mxu0 %v2609
  %v2926 = vpop.f32.mrf.mxu0
  %v2927 = vadd.f32 0.0, %v2926
  %v2928 = vpop.f32.mrf.mxu0
  %v2929 = vadd.f32 0.0, %v2928
  %2930 = vmatmul.bf16.gmra.mxu0 %v2611
  %v2931 = vpop.f32.mrf.mxu0
  %v2932 = vadd.f32 0.0, %v2931
  %v2933 = vpop.f32.mrf.mxu0
  %v2934 = vadd.f32 0.0, %v2933
  %2935 = vdwg.mxu0
  %2936 = vmatpush.bf16.msra.mxu0 %v2756
  %2937 = vmatpush.bf16.msra.mxu0 %v2754
  %2938 = vmatpush.bf16.msra.mxu0 %v2752
  %2939 = vmatpush.bf16.msra.mxu0 %v2750
  %2940 = vmatpush.bf16.msra.mxu0 %v2748
  %2941 = vmatpush.bf16.msra.mxu0 %v2746
  %2942 = vmatpush.bf16.msra.mxu0 %v2744
  %2943 = vmatpush.bf16.msra.mxu0 %v2742
  %2944 = vmatmul.bf16.gmra.mxu0 %v2598
  %v2945 = vpop.f32.mrf.mxu0
  %v2946 = vadd.f32 %v2897, %v2945
  %v2947 = vpop.f32.mrf.mxu0
  %v2948 = vadd.f32 %v2899, %v2947
  %2949 = vmatmul.bf16.gmra.mxu0 %v2600
  %v2950 = vpop.f32.mrf.mxu0
  %v2951 = vadd.f32 %v2902, %v2950
  %v2952 = vpop.f32.mrf.mxu0
  %v2953 = vadd.f32 %v2904, %v2952
  %2954 = vmatmul.bf16.gmra.mxu0 %v2602
  %v2955 = vpop.f32.mrf.mxu0
  %v2956 = vadd.f32 %v2907, %v2955
  %v2957 = vpop.f32.mrf.mxu0
  %v2958 = vadd.f32 %v2909, %v2957
  %2959 = vmatmul.bf16.gmra.mxu0 %v2604
  %v2960 = vpop.f32.mrf.mxu0
  %v2961 = vadd.f32 %v2912, %v2960
  %v2962 = vpop.f32.mrf.mxu0
  %v2963 = vadd.f32 %v2914, %v2962
  %2964 = vmatmul.bf16.gmra.mxu0 %v2606
  %v2965 = vpop.f32.mrf.mxu0
  %v2966 = vadd.f32 %v2917, %v2965
  %v2967 = vpop.f32.mrf.mxu0
  %v2968 = vadd.f32 %v2919, %v2967
  %2969 = vmatmul.bf16.gmra.mxu0 %v2608
  %v2970 = vpop.f32.mrf.mxu0
  %v2971 = vadd.f32 %v2922, %v2970
  %v2972 = vpop.f32.mrf.mxu0
  %v2973 = vadd.f32 %v2924, %v2972
  %2974 = vmatmul.bf16.gmra.mxu0 %v2610
  %v2975 = vpop.f32.mrf.mxu0
  %v2976 = vadd.f32 %v2927, %v2975
  %v2977 = vpop.f32.mrf.mxu0
  %v2978 = vadd.f32 %v2929, %v2977
  %2979 = vmatmul.bf16.gmra.mxu0 %v2612
  %v2980 = vpop.f32.mrf.mxu0
  %v2981 = vadd.f32 %v2932, %v2980
  %v2982 = vpop.f32.mrf.mxu0
  %v2983 = vadd.f32 %v2934, %v2982
  %2984 = vdwg.mxu0
  %v2985 = vadd.f32 %v2409, %v2848
  %v2986 = vadd.f32 %v2410, %v2946
  %v2987 = vadd.f32 %v2411, %v2850
  %v2988 = vadd.f32 %v2412, %v2948
  %v2989 = vadd.f32 %v2413, %v2853
  %v2990 = vadd.f32 %v2414, %v2951
  %v2991 = vadd.f32 %v2415, %v2855
  %v2992 = vadd.f32 %v2416, %v2953
  %v2993 = vadd.f32 %v2417, %v2858
  %v2994 = vadd.f32 %v2418, %v2956
  %v2995 = vadd.f32 %v2419, %v2860
  %v2996 = vadd.f32 %v2420, %v2958
  %v2997 = vadd.f32 %v2421, %v2863
  %v2998 = vadd.f32 %v2422, %v2961
  %v2999 = vadd.f32 %v2423, %v2865
  %v3000 = vadd.f32 %v2424, %v2963
  %v3001 = vadd.f32 %v2425, %v2868
  %v3002 = vadd.f32 %v2426, %v2966
  %v3003 = vadd.f32 %v2427, %v2870
  %v3004 = vadd.f32 %v2428, %v2968
  %v3005 = vadd.f32 %v2429, %v2873
  %v3006 = vadd.f32 %v2430, %v2971
  %v3007 = vadd.f32 %v2431, %v2875
  %v3008 = vadd.f32 %v2432, %v2973
  %v3009 = vadd.f32 %v2433, %v2878
  %v3010 = vadd.f32 %v2434, %v2976
  %v3011 = vadd.f32 %v2435, %v2880
  %v3012 = vadd.f32 %v2436, %v2978
  %v3013 = vadd.f32 %v2437, %v2883
  %v3014 = vadd.f32 %v2438, %v2981
  %v3015 = vadd.f32 %v2439, %v2885
  %v3016 = vadd.f32 %v2440, %v2983
  %3017 = vst [vmem:[%s5] sm:$0xff] %v2985
  %3018 = vst [vmem:[%s5 + $0x8] sm:$0xff] %v2986
  %3019 = vst [vmem:[%s5 + $0x10] sm:$0xff] %v2987
  %3020 = vst [vmem:[%s5 + $0x18] sm:$0xff] %v2988
  %3021 = vst [vmem:[%s5 + $0x20] sm:$0xff] %v2989
  %3022 = vst [vmem:[%s5 + $0x28] sm:$0xff] %v2990
  %3023 = vst [vmem:[%s5 + $0x30] sm:$0xff] %v2991
  %3024 = vst [vmem:[%s5 + $0x38] sm:$0xff] %v2992
  %3025 = vst [vmem:[%s5 + $0x40] sm:$0xff] %v2993
  %3026 = vst [vmem:[%s5 + $0x48] sm:$0xff] %v2994
  %3027 = vst [vmem:[%s5 + $0x50] sm:$0xff] %v2995
  %3028 = vst [vmem:[%s5 + $0x58] sm:$0xff] %v2996
  %3029 = vst [vmem:[%s5 + $0x60] sm:$0xff] %v2997
  %3030 = vst [vmem:[%s5 + $0x68] sm:$0xff] %v2998
  %3031 = vst [vmem:[%s5 + $0x70] sm:$0xff] %v2999
  %3032 = vst [vmem:[%s5 + $0x78] sm:$0xff] %v3000
  %3033 = vst [vmem:[%s5 + $0x80] sm:$0xff] %v3001
  %3034 = vst [vmem:[%s5 + $0x88] sm:$0xff] %v3002
  %3035 = vst [vmem:[%s5 + $0x90] sm:$0xff] %v3003
  %3036 = vst [vmem:[%s5 + $0x98] sm:$0xff] %v3004
  %3037 = vst [vmem:[%s5 + $0xa0] sm:$0xff] %v3005
  %3038 = vst [vmem:[%s5 + $0xa8] sm:$0xff] %v3006
  %3039 = vst [vmem:[%s5 + $0xb0] sm:$0xff] %v3007
  %3040 = vst [vmem:[%s5 + $0xb8] sm:$0xff] %v3008
  %3041 = vst [vmem:[%s5 + $0xc0] sm:$0xff] %v3009
  %3042 = vst [vmem:[%s5 + $0xc8] sm:$0xff] %v3010
  %3043 = vst [vmem:[%s5 + $0xd0] sm:$0xff] %v3011
  %3044 = vst [vmem:[%s5 + $0xd8] sm:$0xff] %v3012
  %3045 = vst [vmem:[%s5 + $0xe0] sm:$0xff] %v3013
  %3046 = vst [vmem:[%s5 + $0xe8] sm:$0xff] %v3014
  %3047 = vst [vmem:[%s5 + $0xf0] sm:$0xff] %v3015
  %3048 = vst [vmem:[%s5 + $0xf8] sm:$0xff] %v3016
  // Predicated region
  $region22: #{_lambda_.1} parent=0 // pred_check
    _
  $region23: #{_lambda_.1} parent=0 // pred_check_branch
    %3050 = sbr.rel (0) target = $region25
  $region24: #{_lambda_.1} parent=0 // pred_region
    _
  $region25: #{_lambda_.1} parent=0 // pred_fallthru
    _
  // Predicated region
  $region26: #{_lambda_.1} parent=0 // pred_check
    _
  $region27: #{_lambda_.1} parent=0 // pred_check_branch
    %3052 = sbr.rel (0) target = $region29
  $region28: #{_lambda_.1} parent=0 // pred_region
    _
  $region29: #{_lambda_.1} parent=0 // pred_fallthru
    _

</llo_original>
